<compile_context>
chip_gen: v7x
topology: tpu7x:2x2x1
jax: 0.10.0
libtpu: 0.0.40
codegen_flags: <defaults>
</compile_context>

<pallas_src>
import functools

import jax
import jax.numpy as jnp
from jax.experimental import pallas as pl
from jax.experimental.pallas import tpu as pltpu


def _gelu_tanh(x):
    # tanh-approximate GELU (explicit formula so it lowers to mul/add/tanh only).
    # TODO(synk): exact erf-based GELU if config.activation_function requires it.
    c = 0.7978845608028654  # sqrt(2/pi)
    return 0.5 * x * (1.0 + jnp.tanh(c * (x + 0.044715 * x * x * x)))


def _rep_fusion_kernel(hidden_ref, kv_ref,
                       ln1_g_ref, ln1_b_ref,
                       wq_ref, bq_ref, wkv_ref, bkv_ref, wo_ref, bo_ref,
                       ln2_g_ref, ln2_b_ref,
                       w1_ref, b1_ref, w2_ref, b2_ref,
                       ln3_g_ref, ln3_b_ref,
                       out_ref, *, num_heads, eps):
    f32 = jnp.float32
    bf16 = jnp.bfloat16

    x = hidden_ref[0]            # (TQ, D) f32 query-tile of hidden_states
    kv = kv_ref[0]               # (S,  D) f32 key_value_states (full S)
    TQ, D = x.shape
    hd = D // num_heads

    def layer_norm(v, g_ref, b_ref):
        # torch.nn.LayerNorm semantics: biased variance, eps inside rsqrt, f32.
        m = jnp.mean(v, axis=-1, keepdims=True)
        c = v - m
        var = jnp.mean(c * c, axis=-1, keepdims=True)
        return c * jax.lax.rsqrt(var + eps) * g_ref[...] + b_ref[...]

    # ---- LayerNorm 1 (f32) ----
    normed = layer_norm(x, ln1_g_ref, ln1_b_ref)                     # (TQ, D)

    nb = normed.astype(bf16)
    kvb = kv.astype(bf16)

    # ---- projections: bf16 operands, f32 accumulation (MXU) ----
    # Attention scaling is pre-folded into wq/bq; K|V weights are fused (D, 2D).
    q = jnp.dot(nb, wq_ref[...], preferred_element_type=f32) + bq_ref[...]      # (TQ, D)
    kvp = jnp.dot(kvb, wkv_ref[...], preferred_element_type=f32) + bkv_ref[...]  # (S, 2D)

    qb = q.astype(bf16)
    kb = kvp[:, :D].astype(bf16)
    vb = kvp[:, D:].astype(bf16)

    # ---- multi-head attention: true hd-wide contractions per head ----
    # (static lane slices; dot_general contracts last dims -> no K transpose)
    attn = jnp.zeros((TQ, D), f32)
    for h in range(num_heads):                     # small, unrolled head loop
        lo = h * hd
        q_h = qb[:, lo:lo + hd]                    # (TQ, hd)
        k_h = kb[:, lo:lo + hd]                    # (S,  hd)
        v_h = vb[:, lo:lo + hd]                    # (S,  hd)
        s = jax.lax.dot_general(q_h, k_h, (((1,), (1,)), ((), ())),
                                preferred_element_type=f32)          # (TQ, S)
        s = s - jnp.max(s, axis=-1, keepdims=True)
        p = jnp.exp(s)
        p = p * pl.reciprocal(jnp.sum(p, axis=-1, keepdims=True), approx=True)
        ctx = jnp.dot(p.astype(bf16), v_h, preferred_element_type=f32)  # (TQ, hd)
        # per-head slice of the output projection; summing over heads == concat+matmul
        attn = attn + jnp.dot(ctx.astype(bf16), wo_ref[lo:lo + hd, :],
                              preferred_element_type=f32)               # (TQ, D)
    attn = attn + bo_ref[...]

    # ---- dropout = identity (eval mode); NOTE: residual is the *normed* hidden ----
    h1 = normed + attn
    h2 = layer_norm(h1, ln2_g_ref, ln2_b_ref)

    # ---- FFN ----
    ffn = jnp.dot(h2.astype(bf16), w1_ref[...], preferred_element_type=f32) + b1_ref[...]
    ffn = _gelu_tanh(ffn)
    ffn = jnp.dot(ffn.astype(bf16), w2_ref[...], preferred_element_type=f32) + b2_ref[...]

    h3 = h2 + ffn
    out = layer_norm(h3, ln3_g_ref, ln3_b_ref)
    out_ref[0] = out.astype(out_ref.dtype)


def representation_fusion(hidden, key_value_states, params, *, num_heads,
                          eps=1e-5, tq=None):
    B, T, D = hidden.shape
    S = key_value_states.shape[1]
    F = params["w_fc1"].shape[1]
    assert D % num_heads == 0
    hd = D // num_heads
    if tq is None:
        tq = min(T, 128)
    assert T % tq == 0, "T must be a multiple of the query tile"

    bf16 = jnp.bfloat16
    scaling = float(hd) ** -0.5
    # Fold the attention scaling into the Q projection (free at prep time) and
    # fuse K|V into one (D, 2D) weight so key_value_states hit the MXU once.
    # Matmul weights are stored/DMAed as bf16 (halves weight DMA + VMEM).
    wq = (params["wq"] * scaling).astype(bf16)
    bq = (params["bq"] * scaling).astype(jnp.float32)
    wkv = jnp.concatenate([params["wk"], params["wv"]], axis=1).astype(bf16)
    bkv = jnp.concatenate([params["bk"], params["bv"]], axis=1).astype(jnp.float32)
    wo = params["wo"].astype(bf16)
    w1 = params["w_fc1"].astype(bf16)
    w2 = params["w_fc2"].astype(bf16)

    kernel = functools.partial(_rep_fusion_kernel, num_heads=num_heads, eps=eps)

    def rep(shape):
        # grid-invariant parameter block (weights / biases / LN params)
        return pl.BlockSpec(shape, lambda b, t: (0, 0))

    return pl.pallas_call(
        kernel,
        out_shape=jax.ShapeDtypeStruct((B, T, D), hidden.dtype),
        grid=(B, T // tq),
        in_specs=[
            pl.BlockSpec((1, tq, D), lambda b, t: (b, t, 0)),   # hidden_states tile
            pl.BlockSpec((1, S, D), lambda b, t: (b, 0, 0)),    # key_value_states (full S)
            rep((1, D)), rep((1, D)),                           # LN1 gamma / beta
            rep((D, D)), rep((1, D)),                           # Wq (scaled), bq (scaled)
            rep((D, 2 * D)), rep((1, 2 * D)),                   # fused W_kv, b_kv
            rep((D, D)), rep((1, D)),                           # Wo, bo
            rep((1, D)), rep((1, D)),                           # LN2 gamma / beta
            rep((D, F)), rep((1, F)),                           # fc1 W, b
            rep((F, D)), rep((1, D)),                           # fc2 W, b
            rep((1, D)), rep((1, D)),                           # LN3 gamma / beta
        ],
        out_specs=pl.BlockSpec((1, tq, D), lambda b, t: (b, t, 0)),
        compiler_params=pltpu.CompilerParams(
            dimension_semantics=("parallel", "parallel"),
            vmem_limit_bytes=48 * 1024 * 1024),
    )(hidden, key_value_states,
      params["ln1_g"], params["ln1_b"],
      wq, bq, wkv, bkv, wo, params["bo"],
      params["ln2_g"], params["ln2_b"],
      w1, params["b_fc1"], w2, params["b_fc2"],
      params["ln3_g"], params["ln3_b"])


def make_params(key, d_model, ffn_dim):
    ks = jax.random.split(key, 18)
    w = lambda k, shape: (0.05 * jax.random.normal(k, shape)).astype(jnp.float32)
    ln = lambda kg, kb: (1.0 + 0.1 * jax.random.normal(kg, (1, d_model)),
                         0.1 * jax.random.normal(kb, (1, d_model)))
    ln1_g, ln1_b = ln(ks[0], ks[1])
    ln2_g, ln2_b = ln(ks[2], ks[3])
    ln3_g, ln3_b = ln(ks[4], ks[5])
    return {
        "ln1_g": ln1_g, "ln1_b": ln1_b,
        "wq": w(ks[6], (d_model, d_model)), "bq": w(ks[7], (1, d_model)),
        "wk": w(ks[8], (d_model, d_model)), "bk": w(ks[9], (1, d_model)),
        "wv": w(ks[10], (d_model, d_model)), "bv": w(ks[11], (1, d_model)),
        "wo": w(ks[12], (d_model, d_model)), "bo": w(ks[13], (1, d_model)),
        "ln2_g": ln2_g, "ln2_b": ln2_b,
        "w_fc1": w(ks[14], (d_model, ffn_dim)), "b_fc1": w(ks[15], (1, ffn_dim)),
        "w_fc2": w(ks[16], (ffn_dim, d_model)), "b_fc2": w(ks[17], (1, d_model)),
        "ln3_g": ln3_g, "ln3_b": ln3_b,
    }


def ref_forward(hidden, kv, p, num_heads, eps=1e-5):
    # pure-JAX f32 reference of RepresentationFusion.forward (eval mode).
    B, T, D = hidden.shape
    S = kv.shape[1]
    hd = D // num_heads

    def ln(x, g, b):
        m = x.mean(-1, keepdims=True)
        v = ((x - m) ** 2).mean(-1, keepdims=True)
        return (x - m) / jnp.sqrt(v + eps) * g + b

    normed = ln(hidden, p["ln1_g"][0], p["ln1_b"][0])
    q = (normed @ p["wq"] + p["bq"][0]) * (float(hd) ** -0.5)
    k = kv @ p["wk"] + p["bk"][0]
    v = kv @ p["wv"] + p["bv"][0]
    qh = q.reshape(B, T, num_heads, hd).transpose(0, 2, 1, 3)
    kh = k.reshape(B, S, num_heads, hd).transpose(0, 2, 1, 3)
    vh = v.reshape(B, S, num_heads, hd).transpose(0, 2, 1, 3)
    scores = jnp.einsum("bhtd,bhsd->bhts", qh, kh)
    probs = jax.nn.softmax(scores, axis=-1)
    ctx = jnp.einsum("bhts,bhsd->bhtd", probs, vh).transpose(0, 2, 1, 3).reshape(B, T, D)
    attn = ctx @ p["wo"] + p["bo"][0]
    h1 = normed + attn                      # module overwrites residual with normed
    h2 = ln(h1, p["ln2_g"][0], p["ln2_b"][0])
    ffn = _gelu_tanh(h2 @ p["w_fc1"] + p["b_fc1"][0])
    ffn = ffn @ p["w_fc2"] + p["b_fc2"][0]
    h3 = h2 + ffn
    return ln(h3, p["ln3_g"][0], p["ln3_b"][0])


if __name__ == "__main__":
    # small config: d_model=128 (multiple of 128 -> lane-dense stores),
    # decoder_attention_heads=4 (head_dim=32), decoder_ffn_dim=256, tgt=src=8, B=2.
    B, T, S, D, H, F = 2, 8, 8, 128, 4, 256
    key = jax.random.PRNGKey(0)
    k_h, k_kv, k_p = jax.random.split(key, 3)
    hidden = jax.random.normal(k_h, (B, T, D), dtype=jnp.float32)
    key_value_states = jax.random.normal(k_kv, (B, S, D), dtype=jnp.float32)
    params = make_params(k_p, D, F)

    out = representation_fusion(hidden, key_value_states, params, num_heads=H)
    out = jax.block_until_ready(out)

    ref = ref_forward(hidden, key_value_states, params, H)
    err = float(jnp.max(jnp.abs(out - ref)))
    assert out.shape == ref.shape
    assert jnp.allclose(out, ref, atol=2e-2, rtol=2e-2), f"mismatch: max abs err {err}"

    # TODO(synk): attention_mask / layer_head_mask / past_key_value /
    # output_attentions paths are not exercised (defaults None/False); dropout
    # runs in eval mode (identity).
    print("KERNEL_OK")
</pallas_src>

<mosaic_0001>
module attributes {stable_mosaic.version = 11 : i64} {
  func.func @_rep_fusion_kernel(%arg0: i32, %arg1: i32, %arg2: memref<1x8x128xf32, #tpu.memory_space<vmem>>, %arg3: memref<1x8x128xf32, #tpu.memory_space<vmem>>, %arg4: memref<1x128xf32, #tpu.memory_space<vmem>>, %arg5: memref<1x128xf32, #tpu.memory_space<vmem>>, %arg6: memref<128x128xbf16, #tpu.memory_space<vmem>>, %arg7: memref<1x128xf32, #tpu.memory_space<vmem>>, %arg8: memref<128x256xbf16, #tpu.memory_space<vmem>>, %arg9: memref<1x256xf32, #tpu.memory_space<vmem>>, %arg10: memref<128x128xbf16, #tpu.memory_space<vmem>>, %arg11: memref<1x128xf32, #tpu.memory_space<vmem>>, %arg12: memref<1x128xf32, #tpu.memory_space<vmem>>, %arg13: memref<1x128xf32, #tpu.memory_space<vmem>>, %arg14: memref<128x256xbf16, #tpu.memory_space<vmem>>, %arg15: memref<1x256xf32, #tpu.memory_space<vmem>>, %arg16: memref<256x128xbf16, #tpu.memory_space<vmem>>, %arg17: memref<1x128xf32, #tpu.memory_space<vmem>>, %arg18: memref<1x128xf32, #tpu.memory_space<vmem>>, %arg19: memref<1x128xf32, #tpu.memory_space<vmem>>, %arg20: memref<1x8x128xf32, #tpu.memory_space<vmem>>) attributes {dimension_semantics = [#tpu.dimension_semantics<parallel>, #tpu.dimension_semantics<parallel>], iteration_bounds = array<i64: 2, 1>, scalar_prefetch = 0 : i64, scratch_operands = 0 : i64, tpu.core_type = #tpu.core_type<tc>, window_params = [{transform_indices = @transform_0, window_bounds = array<i64: 1, 8, 128>}, {transform_indices = @transform_1, window_bounds = array<i64: 1, 8, 128>}, {pipeline_mode = #tpu.pipeline_mode<synchronous>, transform_indices = @transform_2, window_bounds = array<i64: 1, 128>}, {pipeline_mode = #tpu.pipeline_mode<synchronous>, transform_indices = @transform_3, window_bounds = array<i64: 1, 128>}, {pipeline_mode = #tpu.pipeline_mode<synchronous>, transform_indices = @transform_4, window_bounds = array<i64: 128, 128>}, {pipeline_mode = #tpu.pipeline_mode<synchronous>, transform_indices = @transform_5, window_bounds = array<i64: 1, 128>}, {pipeline_mode = #tpu.pipeline_mode<synchronous>, transform_indices = @transform_6, window_bounds = array<i64: 128, 256>}, {pipeline_mode = #tpu.pipeline_mode<synchronous>, transform_indices = @transform_7, window_bounds = array<i64: 1, 256>}, {pipeline_mode = #tpu.pipeline_mode<synchronous>, transform_indices = @transform_8, window_bounds = array<i64: 128, 128>}, {pipeline_mode = #tpu.pipeline_mode<synchronous>, transform_indices = @transform_9, window_bounds = array<i64: 1, 128>}, {pipeline_mode = #tpu.pipeline_mode<synchronous>, transform_indices = @transform_10, window_bounds = array<i64: 1, 128>}, {pipeline_mode = #tpu.pipeline_mode<synchronous>, transform_indices = @transform_11, window_bounds = array<i64: 1, 128>}, {pipeline_mode = #tpu.pipeline_mode<synchronous>, transform_indices = @transform_12, window_bounds = array<i64: 128, 256>}, {pipeline_mode = #tpu.pipeline_mode<synchronous>, transform_indices = @transform_13, window_bounds = array<i64: 1, 256>}, {pipeline_mode = #tpu.pipeline_mode<synchronous>, transform_indices = @transform_14, window_bounds = array<i64: 256, 128>}, {pipeline_mode = #tpu.pipeline_mode<synchronous>, transform_indices = @transform_15, window_bounds = array<i64: 1, 128>}, {pipeline_mode = #tpu.pipeline_mode<synchronous>, transform_indices = @transform_16, window_bounds = array<i64: 1, 128>}, {pipeline_mode = #tpu.pipeline_mode<synchronous>, transform_indices = @transform_17, window_bounds = array<i64: 1, 128>}, {transform_indices = @transform_18, window_bounds = array<i64: 1, 8, 128>}]} {
    %c0 = arith.constant 0 : index
    %c0_0 = arith.constant 0 : index
    %c0_1 = arith.constant 0 : index
    %0 = vector.load %arg2[%c0, %c0_0, %c0_1] : memref<1x8x128xf32, #tpu.memory_space<vmem>>, vector<1x8x128xf32>
    %1 = vector.shape_cast %0 : vector<1x8x128xf32> to vector<8x128xf32>
    %c0_2 = arith.constant 0 : index
    %c0_3 = arith.constant 0 : index
    %c0_4 = arith.constant 0 : index
    %2 = vector.load %arg3[%c0_2, %c0_3, %c0_4] : memref<1x8x128xf32, #tpu.memory_space<vmem>>, vector<1x8x128xf32>
    %3 = vector.shape_cast %2 : vector<1x8x128xf32> to vector<8x128xf32>
    %cst = arith.constant dense<0.000000e+00> : vector<8xf32>
    %4 = vector.multi_reduction <add>, %1, %cst [1] : vector<8x128xf32> to vector<8xf32>
    %5 = vector.shape_cast %4 : vector<8xf32> to vector<8x1xf32>
    %cst_5 = arith.constant 1.280000e+02 : f32
    %6 = vector.broadcast %cst_5 : f32 to vector<8x1xf32>
    %7 = arith.divf %5, %6 : vector<8x1xf32>
    %8 = vector.broadcast %7 : vector<8x1xf32> to vector<8x128xf32>
    %9 = arith.subf %1, %8 : vector<8x128xf32>
    %10 = arith.mulf %9, %9 : vector<8x128xf32>
    %cst_6 = arith.constant dense<0.000000e+00> : vector<8xf32>
    %11 = vector.multi_reduction <add>, %10, %cst_6 [1] : vector<8x128xf32> to vector<8xf32>
    %12 = vector.shape_cast %11 : vector<8xf32> to vector<8x1xf32>
    %cst_7 = arith.constant 1.280000e+02 : f32
    %13 = vector.broadcast %cst_7 : f32 to vector<8x1xf32>
    %14 = arith.divf %12, %13 : vector<8x1xf32>
    %cst_8 = arith.constant 9.99999974E-6 : f32
    %15 = vector.broadcast %cst_8 : f32 to vector<8x1xf32>
    %16 = arith.addf %14, %15 : vector<8x1xf32>
    %17 = math.rsqrt %16 : vector<8x1xf32>
    %18 = vector.broadcast %17 : vector<8x1xf32> to vector<8x128xf32>
    %19 = arith.mulf %9, %18 : vector<8x128xf32>
    %c0_9 = arith.constant 0 : index
    %c0_10 = arith.constant 0 : index
    %20 = vector.load %arg4[%c0_9, %c0_10] : memref<1x128xf32, #tpu.memory_space<vmem>>, vector<1x128xf32>
    %21 = vector.broadcast %20 : vector<1x128xf32> to vector<8x128xf32>
    %22 = arith.mulf %19, %21 : vector<8x128xf32>
    %c0_11 = arith.constant 0 : index
    %c0_12 = arith.constant 0 : index
    %23 = vector.load %arg5[%c0_11, %c0_12] : memref<1x128xf32, #tpu.memory_space<vmem>>, vector<1x128xf32>
    %24 = vector.broadcast %23 : vector<1x128xf32> to vector<8x128xf32>
    %25 = arith.addf %22, %24 : vector<8x128xf32>
    %26 = arith.truncf %25 : vector<8x128xf32> to vector<8x128xbf16>
    %27 = arith.truncf %3 : vector<8x128xf32> to vector<8x128xbf16>
    %c0_13 = arith.constant 0 : index
    %c0_14 = arith.constant 0 : index
    %28 = vector.load %arg6[%c0_13, %c0_14] : memref<128x128xbf16, #tpu.memory_space<vmem>>, vector<128x128xbf16>
    %cst_15 = arith.constant dense<0.000000e+00> : vector<8x128xf32>
    %29 = tpu.matmul %26, %28, %cst_15 {dimension_numbers = #tpu.dot_dimension_numbers<[1], [0], [0], [1], [0, 0, 1, 1], [], []>} : vector<8x128xbf16>, vector<128x128xbf16>, vector<8x128xf32> -> vector<8x128xf32>
    %c0_16 = arith.constant 0 : index
    %c0_17 = arith.constant 0 : index
    %30 = vector.load %arg7[%c0_16, %c0_17] : memref<1x128xf32, #tpu.memory_space<vmem>>, vector<1x128xf32>
    %31 = vector.broadcast %30 : vector<1x128xf32> to vector<8x128xf32>
    %32 = arith.addf %29, %31 : vector<8x128xf32>
    %c0_18 = arith.constant 0 : index
    %c0_19 = arith.constant 0 : index
    %33 = vector.load %arg8[%c0_18, %c0_19] : memref<128x256xbf16, #tpu.memory_space<vmem>>, vector<128x256xbf16>
    %cst_20 = arith.constant dense<0.000000e+00> : vector<8x256xf32>
    %34 = tpu.matmul %27, %33, %cst_20 {dimension_numbers = #tpu.dot_dimension_numbers<[1], [0], [0], [1], [0, 0, 1, 1], [], []>} : vector<8x128xbf16>, vector<128x256xbf16>, vector<8x256xf32> -> vector<8x256xf32>
    %c0_21 = arith.constant 0 : index
    %c0_22 = arith.constant 0 : index
    %35 = vector.load %arg9[%c0_21, %c0_22] : memref<1x256xf32, #tpu.memory_space<vmem>>, vector<1x256xf32>
    %36 = vector.broadcast %35 : vector<1x256xf32> to vector<8x256xf32>
    %37 = arith.addf %34, %36 : vector<8x256xf32>
    %38 = arith.truncf %32 : vector<8x128xf32> to vector<8x128xbf16>
    %39 = vector.extract_strided_slice %37 {offsets = [0, 0], sizes = [8, 128], strides = [1, 1]} : vector<8x256xf32> to vector<8x128xf32>
    %40 = arith.truncf %39 : vector<8x128xf32> to vector<8x128xbf16>
    %41 = vector.extract_strided_slice %37 {offsets = [0, 128], sizes = [8, 128], strides = [1, 1]} : vector<8x256xf32> to vector<8x128xf32>
    %42 = arith.truncf %41 : vector<8x128xf32> to vector<8x128xbf16>
    %cst_23 = arith.constant 0.000000e+00 : f32
    %43 = vector.broadcast %cst_23 : f32 to vector<8x128xf32>
    %44 = vector.extract_strided_slice %38 {offsets = [0, 0], sizes = [8, 32], strides = [1, 1]} : vector<8x128xbf16> to vector<8x32xbf16>
    %45 = vector.extract_strided_slice %40 {offsets = [0, 0], sizes = [8, 32], strides = [1, 1]} : vector<8x128xbf16> to vector<8x32xbf16>
    %46 = vector.extract_strided_slice %42 {offsets = [0, 0], sizes = [8, 32], strides = [1, 1]} : vector<8x128xbf16> to vector<8x32xbf16>
    %cst_24 = arith.constant dense<0.000000e+00> : vector<8x8xf32>
    %47 = tpu.matmul %44, %45, %cst_24 {dimension_numbers = #tpu.dot_dimension_numbers<[1], [1], [0], [0], [0, 0, 1, 0], [], []>} : vector<8x32xbf16>, vector<8x32xbf16>, vector<8x8xf32> -> vector<8x8xf32>
    %cst_25 = arith.constant dense<0xFF800000> : vector<8xf32>
    %48 = vector.multi_reduction <maximumf>, %47, %cst_25 [1] : vector<8x8xf32> to vector<8xf32>
    %49 = vector.shape_cast %48 : vector<8xf32> to vector<8x1xf32>
    %50 = vector.broadcast %49 : vector<8x1xf32> to vector<8x8xf32>
    %51 = arith.subf %47, %50 : vector<8x8xf32>
    %52 = math.exp %51 : vector<8x8xf32>
    %cst_26 = arith.constant dense<0.000000e+00> : vector<8xf32>
    %53 = vector.multi_reduction <add>, %52, %cst_26 [1] : vector<8x8xf32> to vector<8xf32>
    %54 = vector.shape_cast %53 : vector<8xf32> to vector<8x1xf32>
    %55 = tpu.reciprocal %54 {approx = true} : vector<8x1xf32> -> vector<8x1xf32>
    %56 = vector.broadcast %55 : vector<8x1xf32> to vector<8x8xf32>
    %57 = arith.mulf %52, %56 : vector<8x8xf32>
    %58 = arith.truncf %57 : vector<8x8xf32> to vector<8x8xbf16>
    %cst_27 = arith.constant dense<0.000000e+00> : vector<8x32xf32>
    %59 = tpu.matmul %58, %46, %cst_27 {dimension_numbers = #tpu.dot_dimension_numbers<[1], [0], [0], [1], [0, 0, 1, 1], [], []>} : vector<8x8xbf16>, vector<8x32xbf16>, vector<8x32xf32> -> vector<8x32xf32>
    %60 = arith.truncf %59 : vector<8x32xf32> to vector<8x32xbf16>
    %c0_28 = arith.constant 0 : index
    %c0_29 = arith.constant 0 : index
    %61 = vector.load %arg10[%c0_28, %c0_29] : memref<128x128xbf16, #tpu.memory_space<vmem>>, vector<32x128xbf16>
    %cst_30 = arith.constant dense<0.000000e+00> : vector<8x128xf32>
    %62 = tpu.matmul %60, %61, %cst_30 {dimension_numbers = #tpu.dot_dimension_numbers<[1], [0], [0], [1], [0, 0, 1, 1], [], []>} : vector<8x32xbf16>, vector<32x128xbf16>, vector<8x128xf32> -> vector<8x128xf32>
    %63 = arith.addf %43, %62 : vector<8x128xf32>
    %64 = vector.extract_strided_slice %38 {offsets = [0, 32], sizes = [8, 32], strides = [1, 1]} : vector<8x128xbf16> to vector<8x32xbf16>
    %65 = vector.extract_strided_slice %40 {offsets = [0, 32], sizes = [8, 32], strides = [1, 1]} : vector<8x128xbf16> to vector<8x32xbf16>
    %66 = vector.extract_strided_slice %42 {offsets = [0, 32], sizes = [8, 32], strides = [1, 1]} : vector<8x128xbf16> to vector<8x32xbf16>
    %cst_31 = arith.constant dense<0.000000e+00> : vector<8x8xf32>
    %67 = tpu.matmul %64, %65, %cst_31 {dimension_numbers = #tpu.dot_dimension_numbers<[1], [1], [0], [0], [0, 0, 1, 0], [], []>} : vector<8x32xbf16>, vector<8x32xbf16>, vector<8x8xf32> -> vector<8x8xf32>
    %cst_32 = arith.constant dense<0xFF800000> : vector<8xf32>
    %68 = vector.multi_reduction <maximumf>, %67, %cst_32 [1] : vector<8x8xf32> to vector<8xf32>
    %69 = vector.shape_cast %68 : vector<8xf32> to vector<8x1xf32>
    %70 = vector.broadcast %69 : vector<8x1xf32> to vector<8x8xf32>
    %71 = arith.subf %67, %70 : vector<8x8xf32>
    %72 = math.exp %71 : vector<8x8xf32>
    %cst_33 = arith.constant dense<0.000000e+00> : vector<8xf32>
    %73 = vector.multi_reduction <add>, %72, %cst_33 [1] : vector<8x8xf32> to vector<8xf32>
    %74 = vector.shape_cast %73 : vector<8xf32> to vector<8x1xf32>
    %75 = tpu.reciprocal %74 {approx = true} : vector<8x1xf32> -> vector<8x1xf32>
    %76 = vector.broadcast %75 : vector<8x1xf32> to vector<8x8xf32>
    %77 = arith.mulf %72, %76 : vector<8x8xf32>
    %78 = arith.truncf %77 : vector<8x8xf32> to vector<8x8xbf16>
    %cst_34 = arith.constant dense<0.000000e+00> : vector<8x32xf32>
    %79 = tpu.matmul %78, %66, %cst_34 {dimension_numbers = #tpu.dot_dimension_numbers<[1], [0], [0], [1], [0, 0, 1, 1], [], []>} : vector<8x8xbf16>, vector<8x32xbf16>, vector<8x32xf32> -> vector<8x32xf32>
    %80 = arith.truncf %79 : vector<8x32xf32> to vector<8x32xbf16>
    %c32 = arith.constant 32 : index
    %c0_35 = arith.constant 0 : index
    %81 = vector.load %arg10[%c32, %c0_35] : memref<128x128xbf16, #tpu.memory_space<vmem>>, vector<32x128xbf16>
    %cst_36 = arith.constant dense<0.000000e+00> : vector<8x128xf32>
    %82 = tpu.matmul %80, %81, %cst_36 {dimension_numbers = #tpu.dot_dimension_numbers<[1], [0], [0], [1], [0, 0, 1, 1], [], []>} : vector<8x32xbf16>, vector<32x128xbf16>, vector<8x128xf32> -> vector<8x128xf32>
    %83 = arith.addf %63, %82 : vector<8x128xf32>
    %84 = vector.extract_strided_slice %38 {offsets = [0, 64], sizes = [8, 32], strides = [1, 1]} : vector<8x128xbf16> to vector<8x32xbf16>
    %85 = vector.extract_strided_slice %40 {offsets = [0, 64], sizes = [8, 32], strides = [1, 1]} : vector<8x128xbf16> to vector<8x32xbf16>
    %86 = vector.extract_strided_slice %42 {offsets = [0, 64], sizes = [8, 32], strides = [1, 1]} : vector<8x128xbf16> to vector<8x32xbf16>
    %cst_37 = arith.constant dense<0.000000e+00> : vector<8x8xf32>
    %87 = tpu.matmul %84, %85, %cst_37 {dimension_numbers = #tpu.dot_dimension_numbers<[1], [1], [0], [0], [0, 0, 1, 0], [], []>} : vector<8x32xbf16>, vector<8x32xbf16>, vector<8x8xf32> -> vector<8x8xf32>
    %cst_38 = arith.constant dense<0xFF800000> : vector<8xf32>
    %88 = vector.multi_reduction <maximumf>, %87, %cst_38 [1] : vector<8x8xf32> to vector<8xf32>
    %89 = vector.shape_cast %88 : vector<8xf32> to vector<8x1xf32>
    %90 = vector.broadcast %89 : vector<8x1xf32> to vector<8x8xf32>
    %91 = arith.subf %87, %90 : vector<8x8xf32>
    %92 = math.exp %91 : vector<8x8xf32>
    %cst_39 = arith.constant dense<0.000000e+00> : vector<8xf32>
    %93 = vector.multi_reduction <add>, %92, %cst_39 [1] : vector<8x8xf32> to vector<8xf32>
    %94 = vector.shape_cast %93 : vector<8xf32> to vector<8x1xf32>
    %95 = tpu.reciprocal %94 {approx = true} : vector<8x1xf32> -> vector<8x1xf32>
    %96 = vector.broadcast %95 : vector<8x1xf32> to vector<8x8xf32>
    %97 = arith.mulf %92, %96 : vector<8x8xf32>
    %98 = arith.truncf %97 : vector<8x8xf32> to vector<8x8xbf16>
    %cst_40 = arith.constant dense<0.000000e+00> : vector<8x32xf32>
    %99 = tpu.matmul %98, %86, %cst_40 {dimension_numbers = #tpu.dot_dimension_numbers<[1], [0], [0], [1], [0, 0, 1, 1], [], []>} : vector<8x8xbf16>, vector<8x32xbf16>, vector<8x32xf32> -> vector<8x32xf32>
    %100 = arith.truncf %99 : vector<8x32xf32> to vector<8x32xbf16>
    %c64 = arith.constant 64 : index
    %c0_41 = arith.constant 0 : index
    %101 = vector.load %arg10[%c64, %c0_41] : memref<128x128xbf16, #tpu.memory_space<vmem>>, vector<32x128xbf16>
    %cst_42 = arith.constant dense<0.000000e+00> : vector<8x128xf32>
    %102 = tpu.matmul %100, %101, %cst_42 {dimension_numbers = #tpu.dot_dimension_numbers<[1], [0], [0], [1], [0, 0, 1, 1], [], []>} : vector<8x32xbf16>, vector<32x128xbf16>, vector<8x128xf32> -> vector<8x128xf32>
    %103 = arith.addf %83, %102 : vector<8x128xf32>
    %104 = vector.extract_strided_slice %38 {offsets = [0, 96], sizes = [8, 32], strides = [1, 1]} : vector<8x128xbf16> to vector<8x32xbf16>
    %105 = vector.extract_strided_slice %40 {offsets = [0, 96], sizes = [8, 32], strides = [1, 1]} : vector<8x128xbf16> to vector<8x32xbf16>
    %106 = vector.extract_strided_slice %42 {offsets = [0, 96], sizes = [8, 32], strides = [1, 1]} : vector<8x128xbf16> to vector<8x32xbf16>
    %cst_43 = arith.constant dense<0.000000e+00> : vector<8x8xf32>
    %107 = tpu.matmul %104, %105, %cst_43 {dimension_numbers = #tpu.dot_dimension_numbers<[1], [1], [0], [0], [0, 0, 1, 0], [], []>} : vector<8x32xbf16>, vector<8x32xbf16>, vector<8x8xf32> -> vector<8x8xf32>
    %cst_44 = arith.constant dense<0xFF800000> : vector<8xf32>
    %108 = vector.multi_reduction <maximumf>, %107, %cst_44 [1] : vector<8x8xf32> to vector<8xf32>
    %109 = vector.shape_cast %108 : vector<8xf32> to vector<8x1xf32>
    %110 = vector.broadcast %109 : vector<8x1xf32> to vector<8x8xf32>
    %111 = arith.subf %107, %110 : vector<8x8xf32>
    %112 = math.exp %111 : vector<8x8xf32>
    %cst_45 = arith.constant dense<0.000000e+00> : vector<8xf32>
    %113 = vector.multi_reduction <add>, %112, %cst_45 [1] : vector<8x8xf32> to vector<8xf32>
    %114 = vector.shape_cast %113 : vector<8xf32> to vector<8x1xf32>
    %115 = tpu.reciprocal %114 {approx = true} : vector<8x1xf32> -> vector<8x1xf32>
    %116 = vector.broadcast %115 : vector<8x1xf32> to vector<8x8xf32>
    %117 = arith.mulf %112, %116 : vector<8x8xf32>
    %118 = arith.truncf %117 : vector<8x8xf32> to vector<8x8xbf16>
    %cst_46 = arith.constant dense<0.000000e+00> : vector<8x32xf32>
    %119 = tpu.matmul %118, %106, %cst_46 {dimension_numbers = #tpu.dot_dimension_numbers<[1], [0], [0], [1], [0, 0, 1, 1], [], []>} : vector<8x8xbf16>, vector<8x32xbf16>, vector<8x32xf32> -> vector<8x32xf32>
    %120 = arith.truncf %119 : vector<8x32xf32> to vector<8x32xbf16>
    %c96 = arith.constant 96 : index
    %c0_47 = arith.constant 0 : index
    %121 = vector.load %arg10[%c96, %c0_47] : memref<128x128xbf16, #tpu.memory_space<vmem>>, vector<32x128xbf16>
    %cst_48 = arith.constant dense<0.000000e+00> : vector<8x128xf32>
    %122 = tpu.matmul %120, %121, %cst_48 {dimension_numbers = #tpu.dot_dimension_numbers<[1], [0], [0], [1], [0, 0, 1, 1], [], []>} : vector<8x32xbf16>, vector<32x128xbf16>, vector<8x128xf32> -> vector<8x128xf32>
    %123 = arith.addf %103, %122 : vector<8x128xf32>
    %c0_49 = arith.constant 0 : index
    %c0_50 = arith.constant 0 : index
    %124 = vector.load %arg11[%c0_49, %c0_50] : memref<1x128xf32, #tpu.memory_space<vmem>>, vector<1x128xf32>
    %125 = vector.broadcast %124 : vector<1x128xf32> to vector<8x128xf32>
    %126 = arith.addf %123, %125 : vector<8x128xf32>
    %127 = arith.addf %25, %126 : vector<8x128xf32>
    %cst_51 = arith.constant dense<0.000000e+00> : vector<8xf32>
    %128 = vector.multi_reduction <add>, %127, %cst_51 [1] : vector<8x128xf32> to vector<8xf32>
    %129 = vector.shape_cast %128 : vector<8xf32> to vector<8x1xf32>
    %cst_52 = arith.constant 1.280000e+02 : f32
    %130 = vector.broadcast %cst_52 : f32 to vector<8x1xf32>
    %131 = arith.divf %129, %130 : vector<8x1xf32>
    %132 = vector.broadcast %131 : vector<8x1xf32> to vector<8x128xf32>
    %133 = arith.subf %127, %132 : vector<8x128xf32>
    %134 = arith.mulf %133, %133 : vector<8x128xf32>
    %cst_53 = arith.constant dense<0.000000e+00> : vector<8xf32>
    %135 = vector.multi_reduction <add>, %134, %cst_53 [1] : vector<8x128xf32> to vector<8xf32>
    %136 = vector.shape_cast %135 : vector<8xf32> to vector<8x1xf32>
    %cst_54 = arith.constant 1.280000e+02 : f32
    %137 = vector.broadcast %cst_54 : f32 to vector<8x1xf32>
    %138 = arith.divf %136, %137 : vector<8x1xf32>
    %cst_55 = arith.constant 9.99999974E-6 : f32
    %139 = vector.broadcast %cst_55 : f32 to vector<8x1xf32>
    %140 = arith.addf %138, %139 : vector<8x1xf32>
    %141 = math.rsqrt %140 : vector<8x1xf32>
    %142 = vector.broadcast %141 : vector<8x1xf32> to vector<8x128xf32>
    %143 = arith.mulf %133, %142 : vector<8x128xf32>
    %c0_56 = arith.constant 0 : index
    %c0_57 = arith.constant 0 : index
    %144 = vector.load %arg12[%c0_56, %c0_57] : memref<1x128xf32, #tpu.memory_space<vmem>>, vector<1x128xf32>
    %145 = vector.broadcast %144 : vector<1x128xf32> to vector<8x128xf32>
    %146 = arith.mulf %143, %145 : vector<8x128xf32>
    %c0_58 = arith.constant 0 : index
    %c0_59 = arith.constant 0 : index
    %147 = vector.load %arg13[%c0_58, %c0_59] : memref<1x128xf32, #tpu.memory_space<vmem>>, vector<1x128xf32>
    %148 = vector.broadcast %147 : vector<1x128xf32> to vector<8x128xf32>
    %149 = arith.addf %146, %148 : vector<8x128xf32>
    %150 = arith.truncf %149 : vector<8x128xf32> to vector<8x128xbf16>
    %c0_60 = arith.constant 0 : index
    %c0_61 = arith.constant 0 : index
    %151 = vector.load %arg14[%c0_60, %c0_61] : memref<128x256xbf16, #tpu.memory_space<vmem>>, vector<128x256xbf16>
    %cst_62 = arith.constant dense<0.000000e+00> : vector<8x256xf32>
    %152 = tpu.matmul %150, %151, %cst_62 {dimension_numbers = #tpu.dot_dimension_numbers<[1], [0], [0], [1], [0, 0, 1, 1], [], []>} : vector<8x128xbf16>, vector<128x256xbf16>, vector<8x256xf32> -> vector<8x256xf32>
    %c0_63 = arith.constant 0 : index
    %c0_64 = arith.constant 0 : index
    %153 = vector.load %arg15[%c0_63, %c0_64] : memref<1x256xf32, #tpu.memory_space<vmem>>, vector<1x256xf32>
    %154 = vector.broadcast %153 : vector<1x256xf32> to vector<8x256xf32>
    %155 = arith.addf %152, %154 : vector<8x256xf32>
    %cst_65 = arith.constant 5.000000e-01 : f32
    %156 = vector.broadcast %cst_65 : f32 to vector<8x256xf32>
    %157 = arith.mulf %156, %155 : vector<8x256xf32>
    %cst_66 = arith.constant 4.471500e-02 : f32
    %158 = vector.broadcast %cst_66 : f32 to vector<8x256xf32>
    %159 = arith.mulf %158, %155 : vector<8x256xf32>
    %160 = arith.mulf %159, %155 : vector<8x256xf32>
    %161 = arith.mulf %160, %155 : vector<8x256xf32>
    %162 = arith.addf %155, %161 : vector<8x256xf32>
    %cst_67 = arith.constant 0.797884583 : f32
    %163 = vector.broadcast %cst_67 : f32 to vector<8x256xf32>
    %164 = arith.mulf %163, %162 : vector<8x256xf32>
    %165 = math.tanh %164 : vector<8x256xf32>
    %cst_68 = arith.constant 1.000000e+00 : f32
    %166 = vector.broadcast %cst_68 : f32 to vector<8x256xf32>
    %167 = arith.addf %166, %165 : vector<8x256xf32>
    %168 = arith.mulf %157, %167 : vector<8x256xf32>
    %169 = arith.truncf %168 : vector<8x256xf32> to vector<8x256xbf16>
    %c0_69 = arith.constant 0 : index
    %c0_70 = arith.constant 0 : index
    %170 = vector.load %arg16[%c0_69, %c0_70] : memref<256x128xbf16, #tpu.memory_space<vmem>>, vector<256x128xbf16>
    %cst_71 = arith.constant dense<0.000000e+00> : vector<8x128xf32>
    %171 = tpu.matmul %169, %170, %cst_71 {dimension_numbers = #tpu.dot_dimension_numbers<[1], [0], [0], [1], [0, 0, 1, 1], [], []>} : vector<8x256xbf16>, vector<256x128xbf16>, vector<8x128xf32> -> vector<8x128xf32>
    %c0_72 = arith.constant 0 : index
    %c0_73 = arith.constant 0 : index
    %172 = vector.load %arg17[%c0_72, %c0_73] : memref<1x128xf32, #tpu.memory_space<vmem>>, vector<1x128xf32>
    %173 = vector.broadcast %172 : vector<1x128xf32> to vector<8x128xf32>
    %174 = arith.addf %171, %173 : vector<8x128xf32>
    %175 = arith.addf %149, %174 : vector<8x128xf32>
    %cst_74 = arith.constant dense<0.000000e+00> : vector<8xf32>
    %176 = vector.multi_reduction <add>, %175, %cst_74 [1] : vector<8x128xf32> to vector<8xf32>
    %177 = vector.shape_cast %176 : vector<8xf32> to vector<8x1xf32>
    %cst_75 = arith.constant 1.280000e+02 : f32
    %178 = vector.broadcast %cst_75 : f32 to vector<8x1xf32>
    %179 = arith.divf %177, %178 : vector<8x1xf32>
    %180 = vector.broadcast %179 : vector<8x1xf32> to vector<8x128xf32>
    %181 = arith.subf %175, %180 : vector<8x128xf32>
    %182 = arith.mulf %181, %181 : vector<8x128xf32>
    %cst_76 = arith.constant dense<0.000000e+00> : vector<8xf32>
    %183 = vector.multi_reduction <add>, %182, %cst_76 [1] : vector<8x128xf32> to vector<8xf32>
    %184 = vector.shape_cast %183 : vector<8xf32> to vector<8x1xf32>
    %cst_77 = arith.constant 1.280000e+02 : f32
    %185 = vector.broadcast %cst_77 : f32 to vector<8x1xf32>
    %186 = arith.divf %184, %185 : vector<8x1xf32>
    %cst_78 = arith.constant 9.99999974E-6 : f32
    %187 = vector.broadcast %cst_78 : f32 to vector<8x1xf32>
    %188 = arith.addf %186, %187 : vector<8x1xf32>
    %189 = math.rsqrt %188 : vector<8x1xf32>
    %190 = vector.broadcast %189 : vector<8x1xf32> to vector<8x128xf32>
    %191 = arith.mulf %181, %190 : vector<8x128xf32>
    %c0_79 = arith.constant 0 : index
    %c0_80 = arith.constant 0 : index
    %192 = vector.load %arg18[%c0_79, %c0_80] : memref<1x128xf32, #tpu.memory_space<vmem>>, vector<1x128xf32>
    %193 = vector.broadcast %192 : vector<1x128xf32> to vector<8x128xf32>
    %194 = arith.mulf %191, %193 : vector<8x128xf32>
    %c0_81 = arith.constant 0 : index
    %c0_82 = arith.constant 0 : index
    %195 = vector.load %arg19[%c0_81, %c0_82] : memref<1x128xf32, #tpu.memory_space<vmem>>, vector<1x128xf32>
    %196 = vector.broadcast %195 : vector<1x128xf32> to vector<8x128xf32>
    %197 = arith.addf %194, %196 : vector<8x128xf32>
    %c0_83 = arith.constant 0 : index
    %c0_84 = arith.constant 0 : index
    %c0_85 = arith.constant 0 : index
    %198 = vector.load %arg20[%c0_83, %c0_84, %c0_85] : memref<1x8x128xf32, #tpu.memory_space<vmem>>, vector<1x8x128xf32>
    %199 = vector.shape_cast %198 : vector<1x8x128xf32> to vector<8x128xf32>
    %200 = vector.shape_cast %197 : vector<8x128xf32> to vector<1x8x128xf32>
    tpu.vector_store %arg20[%c0_83, %c0_84, %c0_85], %200 {strides = array<i32>} : memref<1x8x128xf32, #tpu.memory_space<vmem>>, vector<1x8x128xf32>,
    return
  }
  func.func @transform_0(%arg0: i32, %arg1: i32) -> (i32, i32, i32) {
    %c0_i32 = arith.constant 0 : i32
    %c0_i32_0 = arith.constant 0 : i32
    return %arg0, %arg1, %c0_i32 : i32, i32, i32
  }
  func.func @transform_1(%arg0: i32, %arg1: i32) -> (i32, i32, i32) {
    %c0_i32 = arith.constant 0 : i32
    %c0_i32_0 = arith.constant 0 : i32
    %c0_i32_1 = arith.constant 0 : i32
    return %arg0, %c0_i32, %c0_i32_0 : i32, i32, i32
  }
  func.func @transform_2(%arg0: i32, %arg1: i32) -> (i32, i32) {
    %c0_i32 = arith.constant 0 : i32
    %c0_i32_0 = arith.constant 0 : i32
    %c0_i32_1 = arith.constant 0 : i32
    return %c0_i32, %c0_i32_0 : i32, i32
  }
  func.func @transform_3(%arg0: i32, %arg1: i32) -> (i32, i32) {
    %c0_i32 = arith.constant 0 : i32
    %c0_i32_0 = arith.constant 0 : i32
    %c0_i32_1 = arith.constant 0 : i32
    return %c0_i32, %c0_i32_0 : i32, i32
  }
  func.func @transform_4(%arg0: i32, %arg1: i32) -> (i32, i32) {
    %c0_i32 = arith.constant 0 : i32
    %c0_i32_0 = arith.constant 0 : i32
    %c0_i32_1 = arith.constant 0 : i32
    return %c0_i32, %c0_i32_0 : i32, i32
  }
  func.func @transform_5(%arg0: i32, %arg1: i32) -> (i32, i32) {
    %c0_i32 = arith.constant 0 : i32
    %c0_i32_0 = arith.constant 0 : i32
    %c0_i32_1 = arith.constant 0 : i32
    return %c0_i32, %c0_i32_0 : i32, i32
  }
  func.func @transform_6(%arg0: i32, %arg1: i32) -> (i32, i32) {
    %c0_i32 = arith.constant 0 : i32
    %c0_i32_0 = arith.constant 0 : i32
    %c0_i32_1 = arith.constant 0 : i32
    return %c0_i32, %c0_i32_0 : i32, i32
  }
  func.func @transform_7(%arg0: i32, %arg1: i32) -> (i32, i32) {
    %c0_i32 = arith.constant 0 : i32
    %c0_i32_0 = arith.constant 0 : i32
    %c0_i32_1 = arith.constant 0 : i32
    return %c0_i32, %c0_i32_0 : i32, i32
  }
  func.func @transform_8(%arg0: i32, %arg1: i32) -> (i32, i32) {
    %c0_i32 = arith.constant 0 : i32
    %c0_i32_0 = arith.constant 0 : i32
    %c0_i32_1 = arith.constant 0 : i32
    return %c0_i32, %c0_i32_0 : i32, i32
  }
  func.func @transform_9(%arg0: i32, %arg1: i32) -> (i32, i32) {
    %c0_i32 = arith.constant 0 : i32
    %c0_i32_0 = arith.constant 0 : i32
    %c0_i32_1 = arith.constant 0 : i32
    return %c0_i32, %c0_i32_0 : i32, i32
  }
  func.func @transform_10(%arg0: i32, %arg1: i32) -> (i32, i32) {
    %c0_i32 = arith.constant 0 : i32
    %c0_i32_0 = arith.constant 0 : i32
    %c0_i32_1 = arith.constant 0 : i32
    return %c0_i32, %c0_i32_0 : i32, i32
  }
  func.func @transform_11(%arg0: i32, %arg1: i32) -> (i32, i32) {
    %c0_i32 = arith.constant 0 : i32
    %c0_i32_0 = arith.constant 0 : i32
    %c0_i32_1 = arith.constant 0 : i32
    return %c0_i32, %c0_i32_0 : i32, i32
  }
  func.func @transform_12(%arg0: i32, %arg1: i32) -> (i32, i32) {
    %c0_i32 = arith.constant 0 : i32
    %c0_i32_0 = arith.constant 0 : i32
    %c0_i32_1 = arith.constant 0 : i32
    return %c0_i32, %c0_i32_0 : i32, i32
  }
  func.func @transform_13(%arg0: i32, %arg1: i32) -> (i32, i32) {
    %c0_i32 = arith.constant 0 : i32
    %c0_i32_0 = arith.constant 0 : i32
    %c0_i32_1 = arith.constant 0 : i32
    return %c0_i32, %c0_i32_0 : i32, i32
  }
  func.func @transform_14(%arg0: i32, %arg1: i32) -> (i32, i32) {
    %c0_i32 = arith.constant 0 : i32
    %c0_i32_0 = arith.constant 0 : i32
    %c0_i32_1 = arith.constant 0 : i32
    return %c0_i32, %c0_i32_0 : i32, i32
  }
  func.func @transform_15(%arg0: i32, %arg1: i32) -> (i32, i32) {
    %c0_i32 = arith.constant 0 : i32
    %c0_i32_0 = arith.constant 0 : i32
    %c0_i32_1 = arith.constant 0 : i32
    return %c0_i32, %c0_i32_0 : i32, i32
  }
  func.func @transform_16(%arg0: i32, %arg1: i32) -> (i32, i32) {
    %c0_i32 = arith.constant 0 : i32
    %c0_i32_0 = arith.constant 0 : i32
    %c0_i32_1 = arith.constant 0 : i32
    return %c0_i32, %c0_i32_0 : i32, i32
  }
  func.func @transform_17(%arg0: i32, %arg1: i32) -> (i32, i32) {
    %c0_i32 = arith.constant 0 : i32
    %c0_i32_0 = arith.constant 0 : i32
    %c0_i32_1 = arith.constant 0 : i32
    return %c0_i32, %c0_i32_0 : i32, i32
  }
  func.func @transform_18(%arg0: i32, %arg1: i32) -> (i32, i32, i32) {
    %c0_i32 = arith.constant 0 : i32
    %c0_i32_0 = arith.constant 0 : i32
    return %arg0, %arg1, %c0_i32 : i32, i32, i32
  }
}

</mosaic_0001>

<llo_original>
// kernel: tpu_custom_call.1
$region0: #{tpu_custom_call.1}
  #allocation0 [shape = 'u32[]', space=smem, size = 0x4, offset = 0x4, fixed_abs, tag = 'smem constant byte address 0x4 - core index']
  #allocation1 [shape = 'u32[144,128]{1,0:T(1,128)}', space=vmem, size = 0x12000, scoped, tag = 'internal scratch']
  %s0 = inlined_call_operand.hbm [shape: f32[2,8,128], index: 0, kind: input, shape index: {}]
  %s1 = inlined_call_operand.hbm [shape: f32[2,8,128], index: 1, kind: input, shape index: {}]
  %s2 = inlined_call_operand.vmem [shape: f32[1,128], index: 2, kind: input, shape index: {}]
  %s3 = inlined_call_operand.vmem [shape: f32[1,128], index: 3, kind: input, shape index: {}]
  %s4 = inlined_call_operand.hbm [shape: bf16[128,128], index: 4, kind: input, shape index: {}]
  %s5 = inlined_call_operand.vmem [shape: f32[1,128], index: 5, kind: input, shape index: {}]
  %s6 = inlined_call_operand.hbm [shape: bf16[128,256], index: 6, kind: input, shape index: {}]
  %s7 = inlined_call_operand.vmem [shape: f32[1,256], index: 7, kind: input, shape index: {}]
  %s8 = inlined_call_operand.hbm [shape: bf16[128,128], index: 8, kind: input, shape index: {}]
  %s9 = inlined_call_operand.vmem [shape: f32[1,128], index: 9, kind: input, shape index: {}]
  %s10 = inlined_call_operand.vmem [shape: f32[1,128], index: 10, kind: input, shape index: {}]
  %s11 = inlined_call_operand.vmem [shape: f32[1,128], index: 11, kind: input, shape index: {}]
  %s12 = inlined_call_operand.hbm [shape: bf16[128,256], index: 12, kind: input, shape index: {}]
  %s13 = inlined_call_operand.vmem [shape: f32[1,256], index: 13, kind: input, shape index: {}]
  %s14 = inlined_call_operand.hbm [shape: bf16[256,128], index: 14, kind: input, shape index: {}]
  %s15 = inlined_call_operand.vmem [shape: f32[1,128], index: 15, kind: input, shape index: {}]
  %s16 = inlined_call_operand.vmem [shape: f32[1,128], index: 16, kind: input, shape index: {}]
  %s17 = inlined_call_operand.vmem [shape: f32[1,128], index: 17, kind: input, shape index: {}]
  %s18 = inlined_call_operand.hbm [shape: f32[2,8,128], index: 18, kind: output, shape index: {}]
  %s19 = sld [smem:[#allocation0]]
  $region133: #{tpu_custom_call.1} parent=0
    _
  %s21 = ssub.s32 1, %s19
  %s22 = scalar_select 0, %s21, %s19
  $region1: #{tpu_custom_call.1} parent=0
    #allocation2 [shape = 'u8[8192]{0}', space=vmem, size = 0x2000, scoped, tag = 'input window, operand 0']
    #allocation3 [shape = 's32[2]{0}', space=sflag, size = 0x8, scoped, tag = 'scoped memory for tpu_custom_call.1']
    #allocation4 [shape = 's32[2]{0}', space=sflag, size = 0x8, scoped, tag = 'scoped memory for tpu_custom_call.1']
    #allocation5 [shape = 'u8[8192]{0}', space=vmem, size = 0x2000, scoped, tag = 'input window, operand 1']
    #allocation6 [shape = 's32[2]{0}', space=sflag, size = 0x8, scoped, tag = 'scoped memory for tpu_custom_call.1']
    #allocation7 [shape = 'u8[32768]{0}', space=vmem, size = 0x8000, scoped, tag = 'input window, operand 4, single buffered']
    #allocation8 [shape = 'u8[65536]{0}', space=vmem, size = 0x10000, scoped, tag = 'input window, operand 6, single buffered']
    #allocation9 [shape = 's32[1]{0}', space=sflag, size = 0x4, scoped, tag = 'scoped memory for tpu_custom_call.1']
    #allocation10 [shape = 'u8[32768]{0}', space=vmem, size = 0x8000, scoped, tag = 'input window, operand 8, single buffered']
    #allocation11 [shape = 'u8[65536]{0}', space=vmem, size = 0x10000, scoped, tag = 'input window, operand 12, single buffered']
    #allocation12 [shape = 's32[1]{0}', space=sflag, size = 0x4, scoped, tag = 'scoped memory for tpu_custom_call.1']
    #allocation13 [shape = 'u8[65536]{0}', space=vmem, size = 0x10000, scoped, tag = 'input window, operand 14, single buffered']
    #allocation14 [shape = 'u8[8192]{0}', space=vmem, size = 0x2000, scoped, tag = 'output window, operand 0']
    %23 = vsyncpa [#allocation3], 0
    %s24 = scalar_lea.sflag [#allocation3], 1
    %25 = vsyncpa %s24, 0
    %26 = vsyncpa [#allocation6], 0
    %s27 = scalar_lea.sflag [#allocation6], 1
    %28 = vsyncpa %s27, 0
    %29 = vsyncpa [#allocation9], 0
    %30 = vsyncpa [#allocation12], 0
    %31 = vsyncpa [#allocation4], 0
    %s32 = scalar_lea.sflag [#allocation4], 1
    %33 = vsyncpa %s32, 0
    loop: start=0, step=1, limit=4
    $region2: #{tpu_custom_call.1} parent=1 // loop_pre_header
      _
    $region3: #{tpu_custom_call.1} parent=1 // loop_header
      %s35 = sphi 0, %s39
      %p36 = scmp.ge.s32.totalorder %s35, 4
      %s42 = sphi 0, %s54
      %s43 = sphi 0, %s50
      %s44 = sphi 0, %s42
      %s45 = sphi 0, %s43
      %s46 = sphi 0, %s44
      %s47 = sphi 0, %s45
      %s59 = sphi 0, %s61
      %s62 = sphi 0, %s59
      %s63 = sphi 0, %s62
      %s79 = sphi 0, %s63
      %s85 = sphi 0, %s87
      %s88 = sphi 0, %s85
      %s89 = sphi 0, %s88
      %s105 = sphi 0, %s89
      %s109 = sphi 0, %s109
      %s111 = sphi 0, %s109
      %s112 = sphi 0, %s111
      %s126 = sphi 0, %s112
      %s130 = sphi 0, %s130
      %s132 = sphi 0, %s130
      %s133 = sphi 0, %s132
      %s147 = sphi 0, %s133
      %s151 = sphi 0, %s151
      %s153 = sphi 0, %s151
      %s154 = sphi 0, %s153
      %s168 = sphi 0, %s154
      %s172 = sphi 0, %s172
      %s174 = sphi 0, %s172
      %s175 = sphi 0, %s174
      %s189 = sphi 0, %s175
      %s193 = sphi 0, %s193
      %s195 = sphi 0, %s193
      %s196 = sphi 0, %s195
      %s210 = sphi 0, %s196
      %s214 = sphi 0, %s214
      %s216 = sphi 0, %s214
      %s217 = sphi 0, %s216
      %s231 = sphi 0, %s217
      %s235 = sphi 0, %s235
      %s237 = sphi 0, %s235
      %s238 = sphi 0, %s237
      %s252 = sphi 0, %s238
      %s256 = sphi 0, %s256
      %s258 = sphi 0, %s256
      %s259 = sphi 0, %s258
      %s273 = sphi 0, %s259
      %s277 = sphi 0, %s277
      %s279 = sphi 0, %s277
      %s280 = sphi 0, %s279
      %s294 = sphi 0, %s280
      %s298 = sphi 0, %s298
      %s300 = sphi 0, %s298
      %s301 = sphi 0, %s300
      %s315 = sphi 0, %s301
      %s319 = sphi 0, %s319
      %s321 = sphi 0, %s319
      %s322 = sphi 0, %s321
      %s336 = sphi 0, %s322
      %s340 = sphi 0, %s340
      %s342 = sphi 0, %s340
      %s343 = sphi 0, %s342
      %s357 = sphi 0, %s343
      %s361 = sphi 0, %s361
      %s363 = sphi 0, %s361
      %s364 = sphi 0, %s363
      %s378 = sphi 0, %s364
      %s382 = sphi 0, %s382
      %s384 = sphi 0, %s382
      %s385 = sphi 0, %s384
      %s399 = sphi 0, %s385
      %s403 = sphi 0, %s403
      %s405 = sphi 0, %s403
      %s406 = sphi 0, %s405
      %s420 = sphi 0, %s406
      %s424 = sphi 0, %s424
      %s426 = sphi 0, %s424
      %s427 = sphi 0, %s426
      %s441 = sphi 0, %s427
      %s449 = sphi 0, %s451
      %s452 = sphi 0, %s449
      %s453 = sphi 0, %s452
      %s469 = sphi 0, %s453
    $region4: #{tpu_custom_call.1} parent=1 // loop_header_branch
      %38 = sbr.rel (%p36) target = $region8
    $region5: #{tpu_custom_call.1} parent=1 // loop_body
      %s40 = ssub.s32 %s35, 1
      %s41 = ssub.s32 %s35, 2
      %s48 = sadd.s32 1, %s43
      %p49 = scmp.ge.s32.totalorder %s48, 1
      %s50 = scalar_select %p49, 0, %s48
      %s51 = sadd.s32 1, %s42
      %s52 = scalar_select %p49, %s51, %s42
      %p53 = scmp.ge.s32.totalorder %s52, 2
      %s54 = scalar_select %p53, 0, %s52
      %s55 = ssub.s32 %s42, %s54
      %s56 = ssub.s32 %s43, %s50
      %s57 = sor.u32 %s55, %s56
      %p58 = scmp.eq.s32.totalorder %s57, 0
      %s60 = sadd.s32 %s59, 1
      %s61 = scalar_select %p58, %s59, %s60
      %p64 = pneg %p58
      %p65 = scmp.eq.s32.totalorder %s35, 1
      %p66 = por %p64, %p65
      %p67 = scmp.ne.s32.totalorder %s59, %s62
      %p68 = scmp.eq.s32.totalorder %s35, 0
      %p69 = por %p67, %p68
      %p70 = scmp.ne.s32.totalorder %s59, %s62
      %p71 = scmp.eq.s32.totalorder %s40, 1
      %p72 = por %p70, %p71
      %p73 = scmp.ne.s32.totalorder %s62, %s63
      %p74 = scmp.eq.s32.totalorder %s40, 0
      %p75 = por %p73, %p74
      %p76 = scmp.ne.s32.totalorder %s62, %s63
      %p77 = scmp.eq.s32.totalorder %s41, 1
      %p78 = por %p76, %p77
      %p80 = scmp.ne.s32.totalorder %s63, %s79
      %p81 = scmp.eq.s32.totalorder %s41, 0
      %p82 = por %p80, %p81
      %s83 = ssub.s32 %s42, %s54
      %p84 = scmp.eq.s32.totalorder %s83, 0
      %s86 = sadd.s32 %s85, 1
      %s87 = scalar_select %p84, %s85, %s86
      %p90 = pneg %p84
      %p91 = scmp.eq.s32.totalorder %s35, 1
      %p92 = por %p90, %p91
      %p93 = scmp.ne.s32.totalorder %s85, %s88
      %p94 = scmp.eq.s32.totalorder %s35, 0
      %p95 = por %p93, %p94
      %p96 = scmp.ne.s32.totalorder %s85, %s88
      %p97 = scmp.eq.s32.totalorder %s40, 1
      %p98 = por %p96, %p97
      %p99 = scmp.ne.s32.totalorder %s88, %s89
      %p100 = scmp.eq.s32.totalorder %s40, 0
      %p101 = por %p99, %p100
      %p102 = scmp.ne.s32.totalorder %s88, %s89
      %p103 = scmp.eq.s32.totalorder %s41, 1
      %p104 = por %p102, %p103
      %p106 = scmp.ne.s32.totalorder %s89, %s105
      %p107 = scmp.eq.s32.totalorder %s41, 0
      %p108 = por %p106, %p107
      %s110 = sadd.s32 %s109, 1
      %p113 = scmp.eq.s32.totalorder %s35, 1
      %p114 = scmp.ne.s32.totalorder %s109, %s111
      %p115 = scmp.eq.s32.totalorder %s35, 0
      %p116 = por %p114, %p115
      %p117 = scmp.ne.s32.totalorder %s109, %s111
      %p118 = scmp.eq.s32.totalorder %s40, 1
      %p119 = por %p117, %p118
      %p120 = scmp.ne.s32.totalorder %s111, %s112
      %p121 = scmp.eq.s32.totalorder %s40, 0
      %p122 = por %p120, %p121
      %p123 = scmp.ne.s32.totalorder %s111, %s112
      %p124 = scmp.eq.s32.totalorder %s41, 1
      %p125 = por %p123, %p124
      %p127 = scmp.ne.s32.totalorder %s112, %s126
      %p128 = scmp.eq.s32.totalorder %s41, 0
      %p129 = por %p127, %p128
      %s131 = sadd.s32 %s130, 1
      %p134 = scmp.eq.s32.totalorder %s35, 1
      %p135 = scmp.ne.s32.totalorder %s130, %s132
      %p136 = scmp.eq.s32.totalorder %s35, 0
      %p137 = por %p135, %p136
      %p138 = scmp.ne.s32.totalorder %s130, %s132
      %p139 = scmp.eq.s32.totalorder %s40, 1
      %p140 = por %p138, %p139
      %p141 = scmp.ne.s32.totalorder %s132, %s133
      %p142 = scmp.eq.s32.totalorder %s40, 0
      %p143 = por %p141, %p142
      %p144 = scmp.ne.s32.totalorder %s132, %s133
      %p145 = scmp.eq.s32.totalorder %s41, 1
      %p146 = por %p144, %p145
      %p148 = scmp.ne.s32.totalorder %s133, %s147
      %p149 = scmp.eq.s32.totalorder %s41, 0
      %p150 = por %p148, %p149
      %s152 = sadd.s32 %s151, 1
      %p155 = scmp.eq.s32.totalorder %s35, 1
      %p156 = scmp.ne.s32.totalorder %s151, %s153
      %p157 = scmp.eq.s32.totalorder %s35, 0
      %p158 = por %p156, %p157
      %p159 = scmp.ne.s32.totalorder %s151, %s153
      %p160 = scmp.eq.s32.totalorder %s40, 1
      %p161 = por %p159, %p160
      %p162 = scmp.ne.s32.totalorder %s153, %s154
      %p163 = scmp.eq.s32.totalorder %s40, 0
      %p164 = por %p162, %p163
      %p165 = scmp.ne.s32.totalorder %s153, %s154
      %p166 = scmp.eq.s32.totalorder %s41, 1
      %p167 = por %p165, %p166
      %p169 = scmp.ne.s32.totalorder %s154, %s168
      %p170 = scmp.eq.s32.totalorder %s41, 0
      %p171 = por %p169, %p170
      %s173 = sadd.s32 %s172, 1
      %p176 = scmp.eq.s32.totalorder %s35, 1
      %p177 = scmp.ne.s32.totalorder %s172, %s174
      %p178 = scmp.eq.s32.totalorder %s35, 0
      %p179 = por %p177, %p178
      %p180 = scmp.ne.s32.totalorder %s172, %s174
      %p181 = scmp.eq.s32.totalorder %s40, 1
      %p182 = por %p180, %p181
      %p183 = scmp.ne.s32.totalorder %s174, %s175
      %p184 = scmp.eq.s32.totalorder %s40, 0
      %p185 = por %p183, %p184
      %p186 = scmp.ne.s32.totalorder %s174, %s175
      %p187 = scmp.eq.s32.totalorder %s41, 1
      %p188 = por %p186, %p187
      %p190 = scmp.ne.s32.totalorder %s175, %s189
      %p191 = scmp.eq.s32.totalorder %s41, 0
      %p192 = por %p190, %p191
      %s194 = sadd.s32 %s193, 1
      %p197 = scmp.eq.s32.totalorder %s35, 1
      %p198 = scmp.ne.s32.totalorder %s193, %s195
      %p199 = scmp.eq.s32.totalorder %s35, 0
      %p200 = por %p198, %p199
      %p201 = scmp.ne.s32.totalorder %s193, %s195
      %p202 = scmp.eq.s32.totalorder %s40, 1
      %p203 = por %p201, %p202
      %p204 = scmp.ne.s32.totalorder %s195, %s196
      %p205 = scmp.eq.s32.totalorder %s40, 0
      %p206 = por %p204, %p205
      %p207 = scmp.ne.s32.totalorder %s195, %s196
      %p208 = scmp.eq.s32.totalorder %s41, 1
      %p209 = por %p207, %p208
      %p211 = scmp.ne.s32.totalorder %s196, %s210
      %p212 = scmp.eq.s32.totalorder %s41, 0
      %p213 = por %p211, %p212
      %s215 = sadd.s32 %s214, 1
      %p218 = scmp.eq.s32.totalorder %s35, 1
      %p219 = scmp.ne.s32.totalorder %s214, %s216
      %p220 = scmp.eq.s32.totalorder %s35, 0
      %p221 = por %p219, %p220
      %p222 = scmp.ne.s32.totalorder %s214, %s216
      %p223 = scmp.eq.s32.totalorder %s40, 1
      %p224 = por %p222, %p223
      %p225 = scmp.ne.s32.totalorder %s216, %s217
      %p226 = scmp.eq.s32.totalorder %s40, 0
      %p227 = por %p225, %p226
      %p228 = scmp.ne.s32.totalorder %s216, %s217
      %p229 = scmp.eq.s32.totalorder %s41, 1
      %p230 = por %p228, %p229
      %p232 = scmp.ne.s32.totalorder %s217, %s231
      %p233 = scmp.eq.s32.totalorder %s41, 0
      %p234 = por %p232, %p233
      %s236 = sadd.s32 %s235, 1
      %p239 = scmp.eq.s32.totalorder %s35, 1
      %p240 = scmp.ne.s32.totalorder %s235, %s237
      %p241 = scmp.eq.s32.totalorder %s35, 0
      %p242 = por %p240, %p241
      %p243 = scmp.ne.s32.totalorder %s235, %s237
      %p244 = scmp.eq.s32.totalorder %s40, 1
      %p245 = por %p243, %p244
      %p246 = scmp.ne.s32.totalorder %s237, %s238
      %p247 = scmp.eq.s32.totalorder %s40, 0
      %p248 = por %p246, %p247
      %p249 = scmp.ne.s32.totalorder %s237, %s238
      %p250 = scmp.eq.s32.totalorder %s41, 1
      %p251 = por %p249, %p250
      %p253 = scmp.ne.s32.totalorder %s238, %s252
      %p254 = scmp.eq.s32.totalorder %s41, 0
      %p255 = por %p253, %p254
      %s257 = sadd.s32 %s256, 1
      %p260 = scmp.eq.s32.totalorder %s35, 1
      %p261 = scmp.ne.s32.totalorder %s256, %s258
      %p262 = scmp.eq.s32.totalorder %s35, 0
      %p263 = por %p261, %p262
      %p264 = scmp.ne.s32.totalorder %s256, %s258
      %p265 = scmp.eq.s32.totalorder %s40, 1
      %p266 = por %p264, %p265
      %p267 = scmp.ne.s32.totalorder %s258, %s259
      %p268 = scmp.eq.s32.totalorder %s40, 0
      %p269 = por %p267, %p268
      %p270 = scmp.ne.s32.totalorder %s258, %s259
      %p271 = scmp.eq.s32.totalorder %s41, 1
      %p272 = por %p270, %p271
      %p274 = scmp.ne.s32.totalorder %s259, %s273
      %p275 = scmp.eq.s32.totalorder %s41, 0
      %p276 = por %p274, %p275
      %s278 = sadd.s32 %s277, 1
      %p281 = scmp.eq.s32.totalorder %s35, 1
      %p282 = scmp.ne.s32.totalorder %s277, %s279
      %p283 = scmp.eq.s32.totalorder %s35, 0
      %p284 = por %p282, %p283
      %p285 = scmp.ne.s32.totalorder %s277, %s279
      %p286 = scmp.eq.s32.totalorder %s40, 1
      %p287 = por %p285, %p286
      %p288 = scmp.ne.s32.totalorder %s279, %s280
      %p289 = scmp.eq.s32.totalorder %s40, 0
      %p290 = por %p288, %p289
      %p291 = scmp.ne.s32.totalorder %s279, %s280
      %p292 = scmp.eq.s32.totalorder %s41, 1
      %p293 = por %p291, %p292
      %p295 = scmp.ne.s32.totalorder %s280, %s294
      %p296 = scmp.eq.s32.totalorder %s41, 0
      %p297 = por %p295, %p296
      %s299 = sadd.s32 %s298, 1
      %p302 = scmp.eq.s32.totalorder %s35, 1
      %p303 = scmp.ne.s32.totalorder %s298, %s300
      %p304 = scmp.eq.s32.totalorder %s35, 0
      %p305 = por %p303, %p304
      %p306 = scmp.ne.s32.totalorder %s298, %s300
      %p307 = scmp.eq.s32.totalorder %s40, 1
      %p308 = por %p306, %p307
      %p309 = scmp.ne.s32.totalorder %s300, %s301
      %p310 = scmp.eq.s32.totalorder %s40, 0
      %p311 = por %p309, %p310
      %p312 = scmp.ne.s32.totalorder %s300, %s301
      %p313 = scmp.eq.s32.totalorder %s41, 1
      %p314 = por %p312, %p313
      %p316 = scmp.ne.s32.totalorder %s301, %s315
      %p317 = scmp.eq.s32.totalorder %s41, 0
      %p318 = por %p316, %p317
      %s320 = sadd.s32 %s319, 1
      %p323 = scmp.eq.s32.totalorder %s35, 1
      %p324 = scmp.ne.s32.totalorder %s319, %s321
      %p325 = scmp.eq.s32.totalorder %s35, 0
      %p326 = por %p324, %p325
      %p327 = scmp.ne.s32.totalorder %s319, %s321
      %p328 = scmp.eq.s32.totalorder %s40, 1
      %p329 = por %p327, %p328
      %p330 = scmp.ne.s32.totalorder %s321, %s322
      %p331 = scmp.eq.s32.totalorder %s40, 0
      %p332 = por %p330, %p331
      %p333 = scmp.ne.s32.totalorder %s321, %s322
      %p334 = scmp.eq.s32.totalorder %s41, 1
      %p335 = por %p333, %p334
      %p337 = scmp.ne.s32.totalorder %s322, %s336
      %p338 = scmp.eq.s32.totalorder %s41, 0
      %p339 = por %p337, %p338
      %s341 = sadd.s32 %s340, 1
      %p344 = scmp.eq.s32.totalorder %s35, 1
      %p345 = scmp.ne.s32.totalorder %s340, %s342
      %p346 = scmp.eq.s32.totalorder %s35, 0
      %p347 = por %p345, %p346
      %p348 = scmp.ne.s32.totalorder %s340, %s342
      %p349 = scmp.eq.s32.totalorder %s40, 1
      %p350 = por %p348, %p349
      %p351 = scmp.ne.s32.totalorder %s342, %s343
      %p352 = scmp.eq.s32.totalorder %s40, 0
      %p353 = por %p351, %p352
      %p354 = scmp.ne.s32.totalorder %s342, %s343
      %p355 = scmp.eq.s32.totalorder %s41, 1
      %p356 = por %p354, %p355
      %p358 = scmp.ne.s32.totalorder %s343, %s357
      %p359 = scmp.eq.s32.totalorder %s41, 0
      %p360 = por %p358, %p359
      %s362 = sadd.s32 %s361, 1
      %p365 = scmp.eq.s32.totalorder %s35, 1
      %p366 = scmp.ne.s32.totalorder %s361, %s363
      %p367 = scmp.eq.s32.totalorder %s35, 0
      %p368 = por %p366, %p367
      %p369 = scmp.ne.s32.totalorder %s361, %s363
      %p370 = scmp.eq.s32.totalorder %s40, 1
      %p371 = por %p369, %p370
      %p372 = scmp.ne.s32.totalorder %s363, %s364
      %p373 = scmp.eq.s32.totalorder %s40, 0
      %p374 = por %p372, %p373
      %p375 = scmp.ne.s32.totalorder %s363, %s364
      %p376 = scmp.eq.s32.totalorder %s41, 1
      %p377 = por %p375, %p376
      %p379 = scmp.ne.s32.totalorder %s364, %s378
      %p380 = scmp.eq.s32.totalorder %s41, 0
      %p381 = por %p379, %p380
      %s383 = sadd.s32 %s382, 1
      %p386 = scmp.eq.s32.totalorder %s35, 1
      %p387 = scmp.ne.s32.totalorder %s382, %s384
      %p388 = scmp.eq.s32.totalorder %s35, 0
      %p389 = por %p387, %p388
      %p390 = scmp.ne.s32.totalorder %s382, %s384
      %p391 = scmp.eq.s32.totalorder %s40, 1
      %p392 = por %p390, %p391
      %p393 = scmp.ne.s32.totalorder %s384, %s385
      %p394 = scmp.eq.s32.totalorder %s40, 0
      %p395 = por %p393, %p394
      %p396 = scmp.ne.s32.totalorder %s384, %s385
      %p397 = scmp.eq.s32.totalorder %s41, 1
      %p398 = por %p396, %p397
      %p400 = scmp.ne.s32.totalorder %s385, %s399
      %p401 = scmp.eq.s32.totalorder %s41, 0
      %p402 = por %p400, %p401
      %s404 = sadd.s32 %s403, 1
      %p407 = scmp.eq.s32.totalorder %s35, 1
      %p408 = scmp.ne.s32.totalorder %s403, %s405
      %p409 = scmp.eq.s32.totalorder %s35, 0
      %p410 = por %p408, %p409
      %p411 = scmp.ne.s32.totalorder %s403, %s405
      %p412 = scmp.eq.s32.totalorder %s40, 1
      %p413 = por %p411, %p412
      %p414 = scmp.ne.s32.totalorder %s405, %s406
      %p415 = scmp.eq.s32.totalorder %s40, 0
      %p416 = por %p414, %p415
      %p417 = scmp.ne.s32.totalorder %s405, %s406
      %p418 = scmp.eq.s32.totalorder %s41, 1
      %p419 = por %p417, %p418
      %p421 = scmp.ne.s32.totalorder %s406, %s420
      %p422 = scmp.eq.s32.totalorder %s41, 0
      %p423 = por %p421, %p422
      %s425 = sadd.s32 %s424, 1
      %p428 = scmp.eq.s32.totalorder %s35, 1
      %p429 = scmp.ne.s32.totalorder %s424, %s426
      %p430 = scmp.eq.s32.totalorder %s35, 0
      %p431 = por %p429, %p430
      %p432 = scmp.ne.s32.totalorder %s424, %s426
      %p433 = scmp.eq.s32.totalorder %s40, 1
      %p434 = por %p432, %p433
      %p435 = scmp.ne.s32.totalorder %s426, %s427
      %p436 = scmp.eq.s32.totalorder %s40, 0
      %p437 = por %p435, %p436
      %p438 = scmp.ne.s32.totalorder %s426, %s427
      %p439 = scmp.eq.s32.totalorder %s41, 1
      %p440 = por %p438, %p439
      %p442 = scmp.ne.s32.totalorder %s427, %s441
      %p443 = scmp.eq.s32.totalorder %s41, 0
      %p444 = por %p442, %p443
      %s445 = ssub.s32 %s42, %s54
      %s446 = ssub.s32 %s43, %s50
      %s447 = sor.u32 %s445, %s446
      %p448 = scmp.eq.s32.totalorder %s447, 0
      %s450 = sadd.s32 %s449, 1
      %s451 = scalar_select %p448, %s449, %s450
      %p454 = pneg %p448
      %p455 = scmp.eq.s32.totalorder %s35, 1
      %p456 = por %p454, %p455
      %p457 = scmp.ne.s32.totalorder %s449, %s452
      %p458 = scmp.eq.s32.totalorder %s35, 0
      %p459 = por %p457, %p458
      %p460 = scmp.ne.s32.totalorder %s449, %s452
      %p461 = scmp.eq.s32.totalorder %s40, 1
      %p462 = por %p460, %p461
      %p463 = scmp.ne.s32.totalorder %s452, %s453
      %p464 = scmp.eq.s32.totalorder %s40, 0
      %p465 = por %p463, %p464
      %p466 = scmp.ne.s32.totalorder %s452, %s453
      %p467 = scmp.eq.s32.totalorder %s41, 1
      %p468 = por %p466, %p467
      %p470 = scmp.ne.s32.totalorder %s453, %s469
      %p471 = scmp.eq.s32.totalorder %s41, 0
      %p472 = por %p470, %p471
      %p473 = scmp.le.s32.totalorder 1, %s35
      %p474 = scmp.lt.s32.totalorder %s35, 3
      %p475 = pnand %p473, %p474
      %p476 = pneg %p475
      // Predicated region
      $region9: #{tpu_custom_call.1} parent=5 // pred_check
        _
      $region10: #{tpu_custom_call.1} parent=5 // pred_check_branch
        %478 = sbr.rel (%p475) target = $region12
      $region11: #{tpu_custom_call.1} parent=5 // pred_region
        %s479 = ssub.s32 %s35, 1
        // Predicated region
        $region13: #{tpu_custom_call.1} parent=11 // pred_check
          %p480 = pneg %p122
        $region14: #{tpu_custom_call.1} parent=11 // pred_check_branch
          %482 = sbr.rel (%p480) target = $region16
        $region15: #{tpu_custom_call.1} parent=11 // pred_region
          _
        $region16: #{tpu_custom_call.1} parent=11 // pred_fallthru
          _
        // Predicated region
        $region17: #{tpu_custom_call.1} parent=11 // pred_check
          %p483 = pneg %p143
        $region18: #{tpu_custom_call.1} parent=11 // pred_check_branch
          %485 = sbr.rel (%p483) target = $region20
        $region19: #{tpu_custom_call.1} parent=11 // pred_region
          _
        $region20: #{tpu_custom_call.1} parent=11 // pred_fallthru
          _
        // Predicated region
        $region21: #{tpu_custom_call.1} parent=11 // pred_check
          %p486 = pneg %p164
        $region22: #{tpu_custom_call.1} parent=11 // pred_check_branch
          %488 = sbr.rel (%p486) target = $region24
        $region23: #{tpu_custom_call.1} parent=11 // pred_region
          %s490 = ssub.s32 1024, 1024
          %491 = vsyncadd [#allocation6], %s490
          %s492 = sshll.u32 [#allocation7], 4
          %s493 = int_to_ptr.vmem [resolvable:$true] %s492
          %498 = dma.hbm_to_vmem [thread:$0]  %s4, 1024, %s493, [#allocation6], 64, 64, 4
        $region24: #{tpu_custom_call.1} parent=11 // pred_fallthru
          _
        // Predicated region
        $region25: #{tpu_custom_call.1} parent=11 // pred_check
          %p499 = pneg %p185
        $region26: #{tpu_custom_call.1} parent=11 // pred_check_branch
          %501 = sbr.rel (%p499) target = $region28
        $region27: #{tpu_custom_call.1} parent=11 // pred_region
          _
        $region28: #{tpu_custom_call.1} parent=11 // pred_fallthru
          _
        // Predicated region
        $region29: #{tpu_custom_call.1} parent=11 // pred_check
          %p502 = pneg %p206
        $region30: #{tpu_custom_call.1} parent=11 // pred_check_branch
          %504 = sbr.rel (%p502) target = $region32
        $region31: #{tpu_custom_call.1} parent=11 // pred_region
          %s506 = ssub.s32 2048, 2048
          %507 = vsyncadd [#allocation9], %s506
          %s508 = sshll.u32 [#allocation8], 4
          %s509 = int_to_ptr.vmem [resolvable:$true] %s508
          %514 = dma.hbm_to_vmem [thread:$0]  %s6, 2048, %s509, [#allocation9], 128, 128, 8
        $region32: #{tpu_custom_call.1} parent=11 // pred_fallthru
          _
        // Predicated region
        $region33: #{tpu_custom_call.1} parent=11 // pred_check
          %p515 = pneg %p227
        $region34: #{tpu_custom_call.1} parent=11 // pred_check_branch
          %517 = sbr.rel (%p515) target = $region36
        $region35: #{tpu_custom_call.1} parent=11 // pred_region
          _
        $region36: #{tpu_custom_call.1} parent=11 // pred_fallthru
          _
        // Predicated region
        $region37: #{tpu_custom_call.1} parent=11 // pred_check
          %p518 = pneg %p248
        $region38: #{tpu_custom_call.1} parent=11 // pred_check_branch
          %520 = sbr.rel (%p518) target = $region40
        $region39: #{tpu_custom_call.1} parent=11 // pred_region
          %s522 = ssub.s32 1024, 1024
          %523 = vsyncadd [#allocation9], %s522
          %s524 = sshll.u32 [#allocation10], 4
          %s525 = int_to_ptr.vmem [resolvable:$true] %s524
          %530 = dma.hbm_to_vmem [thread:$0]  %s8, 1024, %s525, [#allocation9], 64, 64, 4
        $region40: #{tpu_custom_call.1} parent=11 // pred_fallthru
          _
        // Predicated region
        $region41: #{tpu_custom_call.1} parent=11 // pred_check
          %p531 = pneg %p269
        $region42: #{tpu_custom_call.1} parent=11 // pred_check_branch
          %533 = sbr.rel (%p531) target = $region44
        $region43: #{tpu_custom_call.1} parent=11 // pred_region
          _
        $region44: #{tpu_custom_call.1} parent=11 // pred_fallthru
          _
        // Predicated region
        $region45: #{tpu_custom_call.1} parent=11 // pred_check
          %p534 = pneg %p290
        $region46: #{tpu_custom_call.1} parent=11 // pred_check_branch
          %536 = sbr.rel (%p534) target = $region48
        $region47: #{tpu_custom_call.1} parent=11 // pred_region
          _
        $region48: #{tpu_custom_call.1} parent=11 // pred_fallthru
          _
        // Predicated region
        $region49: #{tpu_custom_call.1} parent=11 // pred_check
          %p537 = pneg %p311
        $region50: #{tpu_custom_call.1} parent=11 // pred_check_branch
          %539 = sbr.rel (%p537) target = $region52
        $region51: #{tpu_custom_call.1} parent=11 // pred_region
          _
        $region52: #{tpu_custom_call.1} parent=11 // pred_fallthru
          _
        // Predicated region
        $region53: #{tpu_custom_call.1} parent=11 // pred_check
          %p540 = pneg %p332
        $region54: #{tpu_custom_call.1} parent=11 // pred_check_branch
          %542 = sbr.rel (%p540) target = $region56
        $region55: #{tpu_custom_call.1} parent=11 // pred_region
          %s544 = ssub.s32 2048, 2048
          %545 = vsyncadd [#allocation12], %s544
          %s546 = sshll.u32 [#allocation11], 4
          %s547 = int_to_ptr.vmem [resolvable:$true] %s546
          %552 = dma.hbm_to_vmem [thread:$0]  %s12, 2048, %s547, [#allocation12], 128, 128, 8
        $region56: #{tpu_custom_call.1} parent=11 // pred_fallthru
          _
        // Predicated region
        $region57: #{tpu_custom_call.1} parent=11 // pred_check
          %p553 = pneg %p353
        $region58: #{tpu_custom_call.1} parent=11 // pred_check_branch
          %555 = sbr.rel (%p553) target = $region60
        $region59: #{tpu_custom_call.1} parent=11 // pred_region
          _
        $region60: #{tpu_custom_call.1} parent=11 // pred_fallthru
          _
        // Predicated region
        $region61: #{tpu_custom_call.1} parent=11 // pred_check
          %p556 = pneg %p374
        $region62: #{tpu_custom_call.1} parent=11 // pred_check_branch
          %558 = sbr.rel (%p556) target = $region64
        $region63: #{tpu_custom_call.1} parent=11 // pred_region
          %s560 = ssub.s32 2048, 2048
          %561 = vsyncadd [#allocation12], %s560
          %s562 = sshll.u32 [#allocation13], 4
          %s563 = int_to_ptr.vmem [resolvable:$true] %s562
          %568 = dma.hbm_to_vmem [thread:$0]  %s14, 2048, %s563, [#allocation12], 64, 64, 4
        $region64: #{tpu_custom_call.1} parent=11 // pred_fallthru
          _
        // Predicated region
        $region65: #{tpu_custom_call.1} parent=11 // pred_check
          %p569 = pneg %p395
        $region66: #{tpu_custom_call.1} parent=11 // pred_check_branch
          %571 = sbr.rel (%p569) target = $region68
        $region67: #{tpu_custom_call.1} parent=11 // pred_region
          _
        $region68: #{tpu_custom_call.1} parent=11 // pred_fallthru
          _
        // Predicated region
        $region69: #{tpu_custom_call.1} parent=11 // pred_check
          %p572 = pneg %p416
        $region70: #{tpu_custom_call.1} parent=11 // pred_check_branch
          %574 = sbr.rel (%p572) target = $region72
        $region71: #{tpu_custom_call.1} parent=11 // pred_region
          _
        $region72: #{tpu_custom_call.1} parent=11 // pred_fallthru
          _
        // Predicated region
        $region73: #{tpu_custom_call.1} parent=11 // pred_check
          %p575 = pneg %p437
        $region74: #{tpu_custom_call.1} parent=11 // pred_check_branch
          %577 = sbr.rel (%p575) target = $region76
        $region75: #{tpu_custom_call.1} parent=11 // pred_region
          _
        $region76: #{tpu_custom_call.1} parent=11 // pred_fallthru
          _
      $region12: #{tpu_custom_call.1} parent=5 // pred_fallthru
        _
      %p578 = scmp.lt.s32.totalorder %s35, 2
      // Predicated region
      $region77: #{tpu_custom_call.1} parent=5 // pred_check
        %p579 = pneg %p578
      $region78: #{tpu_custom_call.1} parent=5 // pred_check_branch
        %581 = sbr.rel (%p579) target = $region80
      $region79: #{tpu_custom_call.1} parent=5 // pred_region
        // Predicated region
        $region81: #{tpu_custom_call.1} parent=79 // pred_check
          %p582 = pneg %p69
        $region82: #{tpu_custom_call.1} parent=79 // pred_check_branch
          %584 = sbr.rel (%p582) target = $region84
        $region83: #{tpu_custom_call.1} parent=79 // pred_region
          %s585 = sand.u32 %s59, 1
          %s586 = scalar_lea.sflag [#allocation3], %s585
          %s587 = sand.u32 %s59, 1
          %s588 = smul.addr %s587, 8
          %s589 = scalar_lea.vmem [#allocation2], %s588
          %s591 = ssub.s32 128, 128
          %592 = vsyncadd %s586, %s591
          %s593 = sadd.s32 %s43, %s42
          %s594 = smul.addr %s593, 128
          %s595 = scalar_lea.hbm %s0, %s594
          %s597 = sshll.u32 %s589, 4
          %s598 = int_to_ptr.vmem [resolvable:$true] %s597
          %600 = dma.hbm_to_vmem [thread:$0]  %s595, 128, %s598, %s586
        $region84: #{tpu_custom_call.1} parent=79 // pred_fallthru
          _
        // Predicated region
        $region85: #{tpu_custom_call.1} parent=79 // pred_check
          %p601 = pneg %p95
        $region86: #{tpu_custom_call.1} parent=79 // pred_check_branch
          %603 = sbr.rel (%p601) target = $region88
        $region87: #{tpu_custom_call.1} parent=79 // pred_region
          %s604 = sand.u32 %s35, 1
          %s605 = scalar_lea.sflag [#allocation6], %s604
          %s606 = sand.u32 %s85, 1
          %s607 = smul.addr %s606, 8
          %s608 = scalar_lea.vmem [#allocation5], %s607
          %s610 = ssub.s32 128, 128
          %611 = vsyncadd %s605, %s610
          %s612 = smul.addr %s42, 128
          %s613 = scalar_lea.hbm %s1, %s612
          %s615 = sshll.u32 %s608, 4
          %s616 = int_to_ptr.vmem [resolvable:$true] %s615
          %618 = dma.hbm_to_vmem [thread:$0]  %s613, 128, %s616, %s605
        $region88: #{tpu_custom_call.1} parent=79 // pred_fallthru
          _
      $region80: #{tpu_custom_call.1} parent=5 // pred_fallthru
        _
      %p619 = scmp.le.s32.totalorder 1, %s35
      %p620 = scmp.lt.s32.totalorder %s35, 3
      %p621 = pnand %p619, %p620
      %p622 = pneg %p621
      // Predicated region
      $region89: #{tpu_custom_call.1} parent=5 // pred_check
        _
      $region90: #{tpu_custom_call.1} parent=5 // pred_check_branch
        %624 = sbr.rel (%p621) target = $region92
      $region91: #{tpu_custom_call.1} parent=5 // pred_region
        %s625 = ssub.s32 %s35, 1
        %s626 = sand.u32 %s62, 1
        %s627 = scalar_lea.sflag [#allocation3], %s626
        %s628 = sand.u32 %s62, 1
        %s629 = smul.addr %s628, 8
        %s630 = scalar_lea.vmem [#allocation2], %s629
        // Predicated region
        $region93: #{tpu_custom_call.1} parent=91 // pred_check
          %p631 = pneg %p75
        $region94: #{tpu_custom_call.1} parent=91 // pred_check_branch
          %633 = sbr.rel (%p631) target = $region96
        $region95: #{tpu_custom_call.1} parent=91 // pred_region
          %634 = dma.done %s627, 128
        $region96: #{tpu_custom_call.1} parent=91 // pred_fallthru
          _
        %s635 = sand.u32 %s40, 1
        %s636 = scalar_lea.sflag [#allocation6], %s635
        %s637 = sand.u32 %s88, 1
        %s638 = smul.addr %s637, 8
        %s639 = scalar_lea.vmem [#allocation5], %s638
        // Predicated region
        $region97: #{tpu_custom_call.1} parent=91 // pred_check
          %p640 = pneg %p101
        $region98: #{tpu_custom_call.1} parent=91 // pred_check_branch
          %642 = sbr.rel (%p640) target = $region100
        $region99: #{tpu_custom_call.1} parent=91 // pred_region
          %643 = dma.done %s636, 128
        $region100: #{tpu_custom_call.1} parent=91 // pred_fallthru
          _
        // Predicated region
        $region101: #{tpu_custom_call.1} parent=91 // pred_check
          %p644 = pneg %p164
        $region102: #{tpu_custom_call.1} parent=91 // pred_check_branch
          %646 = sbr.rel (%p644) target = $region104
        $region103: #{tpu_custom_call.1} parent=91 // pred_region
          %647 = dma.done [#allocation6], 1024
        $region104: #{tpu_custom_call.1} parent=91 // pred_fallthru
          _
        // Predicated region
        $region105: #{tpu_custom_call.1} parent=91 // pred_check
          %p648 = pneg %p206
        $region106: #{tpu_custom_call.1} parent=91 // pred_check_branch
          %650 = sbr.rel (%p648) target = $region108
        $region107: #{tpu_custom_call.1} parent=91 // pred_region
          %651 = dma.done [#allocation9], 2048
        $region108: #{tpu_custom_call.1} parent=91 // pred_fallthru
          _
        // Predicated region
        $region109: #{tpu_custom_call.1} parent=91 // pred_check
          %p652 = pneg %p248
        $region110: #{tpu_custom_call.1} parent=91 // pred_check_branch
          %654 = sbr.rel (%p652) target = $region112
        $region111: #{tpu_custom_call.1} parent=91 // pred_region
          %655 = dma.done [#allocation9], 1024
        $region112: #{tpu_custom_call.1} parent=91 // pred_fallthru
          _
        // Predicated region
        $region113: #{tpu_custom_call.1} parent=91 // pred_check
          %p656 = pneg %p332
        $region114: #{tpu_custom_call.1} parent=91 // pred_check_branch
          %658 = sbr.rel (%p656) target = $region116
        $region115: #{tpu_custom_call.1} parent=91 // pred_region
          %659 = dma.done [#allocation12], 2048
        $region116: #{tpu_custom_call.1} parent=91 // pred_fallthru
          _
        // Predicated region
        $region117: #{tpu_custom_call.1} parent=91 // pred_check
          %p660 = pneg %p374
        $region118: #{tpu_custom_call.1} parent=91 // pred_check_branch
          %662 = sbr.rel (%p660) target = $region120
        $region119: #{tpu_custom_call.1} parent=91 // pred_region
          %663 = dma.done [#allocation12], 2048
        $region120: #{tpu_custom_call.1} parent=91 // pred_fallthru
          _
        %s664 = sand.u32 %s62, 1
        %s665 = scalar_lea.sflag [#allocation3], %s664
        %s666 = sand.u32 %s62, 1
        %s667 = smul.addr %s666, 8
        %s668 = scalar_lea.vmem [#allocation2], %s667
        %p669 = pneg %p75
        %p670 = pneg %p72
        %s671 = sand.u32 %s40, 1
        %s672 = scalar_lea.sflag [#allocation6], %s671
        %s673 = sand.u32 %s88, 1
        %s674 = smul.addr %s673, 8
        %s675 = scalar_lea.vmem [#allocation5], %s674
        %p676 = pneg %p101
        %p677 = pneg %p98
        %p678 = pneg %p122
        %p679 = pneg %p119
        %p680 = pneg %p143
        %p681 = pneg %p140
        %p682 = pneg %p164
        %p683 = pneg %p161
        %p684 = pneg %p185
        %p685 = pneg %p182
        %p686 = pneg %p206
        %p687 = pneg %p203
        %p688 = pneg %p227
        %p689 = pneg %p224
        %p690 = pneg %p248
        %p691 = pneg %p245
        %p692 = pneg %p269
        %p693 = pneg %p266
        %p694 = pneg %p290
        %p695 = pneg %p287
        %p696 = pneg %p311
        %p697 = pneg %p308
        %p698 = pneg %p332
        %p699 = pneg %p329
        %p700 = pneg %p353
        %p701 = pneg %p350
        %p702 = pneg %p374
        %p703 = pneg %p371
        %p704 = pneg %p395
        %p705 = pneg %p392
        %p706 = pneg %p416
        %p707 = pneg %p413
        %p708 = pneg %p437
        %p709 = pneg %p434
        %p710 = pneg %p465
        %p711 = pneg %p462
        %s712 = sand.u32 %s452, 1
        %s713 = scalar_lea.sflag [#allocation4], %s712
        %s714 = sand.u32 %s452, 1
        %s715 = smul.addr %s714, 8
        %s716 = scalar_lea.vmem [#allocation14], %s715
        %v718 = vld [vmem:[%s630] sm:$0xff]
        %v719 = vld [vmem:[%s639] sm:$0xff]
        %720 = vadd.xlane.f32.xlu0 %v718
        %v721 = vpop.xlane.xlu0 %720
        %v722 = vrcp.pop 128.0
        %v723 = vmul.f32 %v721, %v722
        %v724 = vsub.f32 %v718, %v723
        %v725 = vmul.f32 %v724, %v724
        %726 = vadd.xlane.f32.xlu0 %v725
        %v727 = vpop.xlane.xlu0 %726
        %v728 = vmul.f32 %v727, %v722
        %v729 = vadd.f32 %v728, 1e-05
        %v730 = vrsqrt.pop %v729
        %v731 = vmul.f32 %v724, %v730
        %v732 = vld [vmem:[%s2] sm:$0x1]
        %v734 = vlaneseq
        %v735 = vshrl.u32 %v734, 7
        %v736 = vsub.s32 0, %v735
        %v737 = vrot.slane %v732, %v736
        %v739 = vmul.f32 %v731, %v737
        %v740 = vld [vmem:[%s3] sm:$0x1]
        %v742 = vlaneseq
        %v743 = vshrl.u32 %v742, 7
        %v744 = vsub.s32 0, %v743
        %v745 = vrot.slane %v740, %v744
        %v747 = vadd.f32 %v739, %v745
        %v748 = vpack.c.bf16 %v747, %v747
        %v749 = vpack.c.bf16 %v719, %v719
        %v750 = vld [vmem:[#allocation7] sm:$0xf]
        %v751 = vld [vmem:[#allocation7 + $0x4] sm:$0xf]
        %v752 = vld [vmem:[#allocation7 + $0x8] sm:$0xf]
        %v753 = vld [vmem:[#allocation7 + $0xc] sm:$0xf]
        %v754 = vld [vmem:[#allocation7 + $0x10] sm:$0xf]
        %v755 = vld [vmem:[#allocation7 + $0x14] sm:$0xf]
        %v756 = vld [vmem:[#allocation7 + $0x18] sm:$0xf]
        %v757 = vld [vmem:[#allocation7 + $0x1c] sm:$0xf]
        %v758 = vld [vmem:[#allocation7 + $0x20] sm:$0xf]
        %v759 = vld [vmem:[#allocation7 + $0x24] sm:$0xf]
        %v760 = vld [vmem:[#allocation7 + $0x28] sm:$0xf]
        %v761 = vld [vmem:[#allocation7 + $0x2c] sm:$0xf]
        %v762 = vld [vmem:[#allocation7 + $0x30] sm:$0xf]
        %v763 = vld [vmem:[#allocation7 + $0x34] sm:$0xf]
        %v764 = vld [vmem:[#allocation7 + $0x38] sm:$0xf]
        %v765 = vld [vmem:[#allocation7 + $0x3c] sm:$0xf]
        %v766 = vld [vmem:[%s5] sm:$0x1]
        %v768 = vlaneseq
        %v769 = vshrl.u32 %v768, 7
        %v770 = vsub.s32 0, %v769
        %v771 = vrot.slane %v766, %v770
        %v789 = vunpack.c.l.b16 %v750
        %v790 = vunpack.c.l.b16 %v751
        %v791 = vunpack.c.l.b16 %v752
        %v792 = vunpack.c.l.b16 %v753
        %v793 = vunpack.c.l.b16 %v754
        %v794 = vunpack.c.l.b16 %v755
        %v795 = vunpack.c.l.b16 %v756
        %v796 = vunpack.c.l.b16 %v757
        %v797 = vunpack.c.l.b16 %v758
        %v798 = vunpack.c.l.b16 %v759
        %v799 = vunpack.c.l.b16 %v760
        %v800 = vunpack.c.l.b16 %v761
        %v801 = vunpack.c.l.b16 %v762
        %v802 = vunpack.c.l.b16 %v763
        %v803 = vunpack.c.l.b16 %v764
        %v804 = vunpack.c.l.b16 %v765
        %v805 = vpack.c.b16 %v790, %v789
        %v806 = vpack.c.b16 %v792, %v791
        %v807 = vpack.c.b16 %v794, %v793
        %v808 = vpack.c.b16 %v796, %v795
        %v809 = vpack.c.b16 %v798, %v797
        %v810 = vpack.c.b16 %v800, %v799
        %v811 = vpack.c.b16 %v802, %v801
        %v812 = vpack.c.b16 %v804, %v803
        %821 = vmatprep.subr.bf16.mxu0 0
        %822 = vmatpush1.bf16.msra.mxu0 %v805
        %823 = vmatprep.subr.bf16.mxu0 0
        %824 = vmatpush1.bf16.msra.mxu0 %v806
        %825 = vmatprep.subr.bf16.mxu0 0
        %826 = vmatpush1.bf16.msra.mxu0 %v807
        %827 = vmatprep.subr.bf16.mxu0 0
        %828 = vmatpush1.bf16.msra.mxu0 %v808
        %829 = vmatprep.subr.bf16.mxu0 0
        %830 = vmatpush1.bf16.msra.mxu0 %v809
        %831 = vmatprep.subr.bf16.mxu0 0
        %832 = vmatpush1.bf16.msra.mxu0 %v810
        %833 = vmatprep.subr.bf16.mxu0 0
        %834 = vmatpush1.bf16.msra.mxu0 %v811
        %835 = vmatprep.subr.bf16.mxu0 0
        %836 = vmatpush1.bf16.msra.mxu0 %v812
        %837 = vmatprep.subr.bf16.mxu0 0
        %838 = vmatpush1.bf16.msra.mxu0 0
        %839 = vmatprep.subr.bf16.mxu0 0
        %840 = vmatpush1.bf16.msra.mxu0 0
        %841 = vmatprep.subr.bf16.mxu0 0
        %842 = vmatpush1.bf16.msra.mxu0 0
        %843 = vmatprep.subr.bf16.mxu0 0
        %844 = vmatpush1.bf16.msra.mxu0 0
        %845 = vmatprep.subr.bf16.mxu0 0
        %846 = vmatpush1.bf16.msra.mxu0 0
        %847 = vmatprep.subr.bf16.mxu0 0
        %848 = vmatpush1.bf16.msra.mxu0 0
        %849 = vmatprep.subr.bf16.mxu0 0
        %850 = vmatpush1.bf16.msra.mxu0 0
        %851 = vmatprep.subr.bf16.mxu0 0
        %852 = vmatpush1.bf16.msra.mxu0 0
        %853 = vmatprep.mubr.bf16.mxu0 0
        %854 = vmatmul.mubr.bf16.gmra.mrb[0].mxu0 %v748
        %v855 = vpop.f32.mrb[0].mxu0
        %v856 = vadd.f32 %v771, %v855
        %v857 = vpop.f32.mrb[0].mxu0
        %v858 = vpop.f32.mrb[0].mxu0
        %v859 = vpop.f32.mrb[0].mxu0
        %860 = vdwg.mxu0
        %v861 = vld [vmem:[#allocation8] sm:$0xff]
        %v862 = vld [vmem:[#allocation8 + $0x8] sm:$0xff]
        %v863 = vld [vmem:[#allocation8 + $0x10] sm:$0xff]
        %v864 = vld [vmem:[#allocation8 + $0x18] sm:$0xff]
        %v865 = vld [vmem:[#allocation8 + $0x20] sm:$0xff]
        %v866 = vld [vmem:[#allocation8 + $0x28] sm:$0xff]
        %v867 = vld [vmem:[#allocation8 + $0x30] sm:$0xff]
        %v868 = vld [vmem:[#allocation8 + $0x38] sm:$0xff]
        %v869 = vld [vmem:[#allocation8 + $0x40] sm:$0xff]
        %v870 = vld [vmem:[#allocation8 + $0x48] sm:$0xff]
        %v871 = vld [vmem:[#allocation8 + $0x50] sm:$0xff]
        %v872 = vld [vmem:[#allocation8 + $0x58] sm:$0xff]
        %v873 = vld [vmem:[#allocation8 + $0x60] sm:$0xff]
        %v874 = vld [vmem:[#allocation8 + $0x68] sm:$0xff]
        %v875 = vld [vmem:[#allocation8 + $0x70] sm:$0xff]
        %v876 = vld [vmem:[#allocation8 + $0x78] sm:$0xff]
        %v877 = vld [vmem:[%s7] sm:$0x3]
        %v879 = vlaneseq
        %v880 = vshrl.u32 %v879, 7
        %v881 = vsub.s32 0, %v880
        %v882 = vrot.slane %v877, %v881
        %v883 = vlaneseq
        %v884 = vshrl.u32 %v883, 7
        %v885 = vsub.s32 1, %v884
        %v886 = vrot.slane %v877, %v885
        %v905 = vunpack.c.l.b16 %v861
        %v906 = vunpack.c.h.b16 %v861
        %v907 = vunpack.c.l.b16 %v862
        %v908 = vunpack.c.h.b16 %v862
        %v909 = vunpack.c.l.b16 %v863
        %v910 = vunpack.c.h.b16 %v863
        %v911 = vunpack.c.l.b16 %v864
        %v912 = vunpack.c.h.b16 %v864
        %v913 = vunpack.c.l.b16 %v865
        %v914 = vunpack.c.h.b16 %v865
        %v915 = vunpack.c.l.b16 %v866
        %v916 = vunpack.c.h.b16 %v866
        %v917 = vunpack.c.l.b16 %v867
        %v918 = vunpack.c.h.b16 %v867
        %v919 = vunpack.c.l.b16 %v868
        %v920 = vunpack.c.h.b16 %v868
        %v921 = vunpack.c.l.b16 %v869
        %v922 = vunpack.c.h.b16 %v869
        %v923 = vunpack.c.l.b16 %v870
        %v924 = vunpack.c.h.b16 %v870
        %v925 = vunpack.c.l.b16 %v871
        %v926 = vunpack.c.h.b16 %v871
        %v927 = vunpack.c.l.b16 %v872
        %v928 = vunpack.c.h.b16 %v872
        %v929 = vunpack.c.l.b16 %v873
        %v930 = vunpack.c.h.b16 %v873
        %v931 = vunpack.c.l.b16 %v874
        %v932 = vunpack.c.h.b16 %v874
        %v933 = vunpack.c.l.b16 %v875
        %v934 = vunpack.c.h.b16 %v875
        %v935 = vunpack.c.l.b16 %v876
        %v936 = vunpack.c.h.b16 %v876
        %v937 = vpack.c.b16 %v907, %v905
        %v938 = vpack.c.b16 %v908, %v906
        %v939 = vpack.c.b16 %v911, %v909
        %v940 = vpack.c.b16 %v912, %v910
        %v941 = vpack.c.b16 %v915, %v913
        %v942 = vpack.c.b16 %v916, %v914
        %v943 = vpack.c.b16 %v919, %v917
        %v944 = vpack.c.b16 %v920, %v918
        %v945 = vpack.c.b16 %v923, %v921
        %v946 = vpack.c.b16 %v924, %v922
        %v947 = vpack.c.b16 %v927, %v925
        %v948 = vpack.c.b16 %v928, %v926
        %v949 = vpack.c.b16 %v931, %v929
        %v950 = vpack.c.b16 %v932, %v930
        %v951 = vpack.c.b16 %v935, %v933
        %v952 = vpack.c.b16 %v936, %v934
        %969 = vmatprep.subr.bf16.mxu0 %v938
        %970 = vmatpush1.bf16.msra.mxu0 %v937
        %971 = vmatprep.subr.bf16.mxu0 %v940
        %972 = vmatpush1.bf16.msra.mxu0 %v939
        %973 = vmatprep.subr.bf16.mxu0 %v942
        %974 = vmatpush1.bf16.msra.mxu0 %v941
        %975 = vmatprep.subr.bf16.mxu0 %v944
        %976 = vmatpush1.bf16.msra.mxu0 %v943
        %977 = vmatprep.subr.bf16.mxu0 %v946
        %978 = vmatpush1.bf16.msra.mxu0 %v945
        %979 = vmatprep.subr.bf16.mxu0 %v948
        %980 = vmatpush1.bf16.msra.mxu0 %v947
        %981 = vmatprep.subr.bf16.mxu0 %v950
        %982 = vmatpush1.bf16.msra.mxu0 %v949
        %983 = vmatprep.subr.bf16.mxu0 %v952
        %984 = vmatpush1.bf16.msra.mxu0 %v951
        %985 = vmatprep.subr.bf16.mxu0 0
        %986 = vmatpush1.bf16.msra.mxu0 0
        %987 = vmatprep.subr.bf16.mxu0 0
        %988 = vmatpush1.bf16.msra.mxu0 0
        %989 = vmatprep.subr.bf16.mxu0 0
        %990 = vmatpush1.bf16.msra.mxu0 0
        %991 = vmatprep.subr.bf16.mxu0 0
        %992 = vmatpush1.bf16.msra.mxu0 0
        %993 = vmatprep.subr.bf16.mxu0 0
        %994 = vmatpush1.bf16.msra.mxu0 0
        %995 = vmatprep.subr.bf16.mxu0 0
        %996 = vmatpush1.bf16.msra.mxu0 0
        %997 = vmatprep.subr.bf16.mxu0 0
        %998 = vmatpush1.bf16.msra.mxu0 0
        %999 = vmatprep.subr.bf16.mxu0 0
        %1000 = vmatpush1.bf16.msra.mxu0 0
        %1001 = vmatprep.mubr.bf16.mxu0 0
        %1002 = vmatmul.mubr.bf16.gmra.mrb[0].mxu0 %v749
        %v1003 = vpop.f32.mrb[0].mxu0
        %v1004 = vadd.f32 %v882, %v1003
        %v1005 = vpop.f32.mrb[0].mxu0
        %v1006 = vadd.f32 %v886, %v1005
        %v1007 = vpop.f32.mrb[0].mxu0
        %v1008 = vpop.f32.mrb[0].mxu0
        %1009 = vdwg.mxu0
        %v1010 = vpack.c.bf16 %v856, %v856
        %v1011 = vpack.c.bf16 %v1004, %v1004
        %v1012 = vpack.c.bf16 %v1006, %v1006
        %vm1013 = vcmask 261120
        %v1015 = vsel %vm1013, %v1010, 0
        %v1018 = vsel %vm1013, %v1011, 0
        %1020 = vmatprep.subr.bf16.mxu0 0
        %1021 = vmatpush1.bf16.xpose.msra.mxu0 %v1018
        %1022 = vmatprep.subr.bf16.mxu0 0
        %1023 = vmatpush1.bf16.xpose.msra.mxu0 0
        %1024 = vmatprep.subr.bf16.mxu0 0
        %1025 = vmatpush1.bf16.xpose.msra.mxu0 0
        %1026 = vmatprep.subr.bf16.mxu0 0
        %1027 = vmatpush1.bf16.xpose.msra.mxu0 0
        %1028 = vmatprep.subr.bf16.mxu0 0
        %1029 = vmatpush1.bf16.xpose.msra.mxu0 0
        %1030 = vmatprep.subr.bf16.mxu0 0
        %1031 = vmatpush1.bf16.xpose.msra.mxu0 0
        %1032 = vmatprep.subr.bf16.mxu0 0
        %1033 = vmatpush1.bf16.xpose.msra.mxu0 0
        %1034 = vmatprep.subr.bf16.mxu0 0
        %1035 = vmatpush1.bf16.xpose.msra.mxu0 0
        %1036 = vmatprep.subr.bf16.mxu0 0
        %1037 = vmatpush1.bf16.xpose.msra.mxu0 0
        %1038 = vmatprep.subr.bf16.mxu0 0
        %1039 = vmatpush1.bf16.xpose.msra.mxu0 0
        %1040 = vmatprep.subr.bf16.mxu0 0
        %1041 = vmatpush1.bf16.xpose.msra.mxu0 0
        %1042 = vmatprep.subr.bf16.mxu0 0
        %1043 = vmatpush1.bf16.xpose.msra.mxu0 0
        %1044 = vmatprep.subr.bf16.mxu0 0
        %1045 = vmatpush1.bf16.xpose.msra.mxu0 0
        %1046 = vmatprep.subr.bf16.mxu0 0
        %1047 = vmatpush1.bf16.xpose.msra.mxu0 0
        %1048 = vmatprep.subr.bf16.mxu0 0
        %1049 = vmatpush1.bf16.xpose.msra.mxu0 0
        %1050 = vmatprep.subr.bf16.mxu0 0
        %1051 = vmatpush1.bf16.xpose.msra.mxu0 0
        %1052 = vmatprep.mubr.bf16.mxu0 0
        %1053 = vmatmul.mubr.bf16.gmra.mrb[0].mxu0 %v1015
        %v1054 = vpop.f32.mrb[0].mxu0
        %v1055 = vadd.f32 0.0, %v1054
        %v1056 = vpop.f32.mrb[0].mxu0
        %v1057 = vpop.f32.mrb[0].mxu0
        %v1058 = vpop.f32.mrb[0].mxu0
        %1059 = vdwg.mxu0
        %vm1060 = vcmask 64512
        %v1061 = vsel %vm1060, %v1055, -inf
        %1062 = vmax.xlane.f32.xlu0 %v1061
        %v1063 = vpop.xlane.xlu0 %1062
        %v1064 = vsub.f32 %v1055, %v1063
        %v1065 = vmul.f32 %v1064, 1.442695
        %v1066 = vpow.pop %v1065
        %v1067 = vsel %vm1060, %v1066, 0.0
        %1068 = vadd.xlane.f32.xlu0 %v1067
        %v1069 = vpop.xlane.xlu0 %1068
        %v1070 = vrcp.pop %v1069
        %v1071 = vmul.f32 %v1066, %v1070
        %v1072 = vpack.c.bf16 %v1071, %v1071
        %v1074 = vsel %vm1060, %v1072, 0
        %vm1076 = vcmask 1043456
        %v1078 = vsel %vm1076, %v1012, 0
        %1080 = vmatprep.subr.bf16.mxu0 0
        %1081 = vmatpush1.bf16.msra.mxu0 %v1078
        %1082 = vmatprep.subr.bf16.mxu0 0
        %1083 = vmatpush1.bf16.msra.mxu0 0
        %1084 = vmatprep.subr.bf16.mxu0 0
        %1085 = vmatpush1.bf16.msra.mxu0 0
        %1086 = vmatprep.subr.bf16.mxu0 0
        %1087 = vmatpush1.bf16.msra.mxu0 0
        %1088 = vmatprep.subr.bf16.mxu0 0
        %1089 = vmatpush1.bf16.msra.mxu0 0
        %1090 = vmatprep.subr.bf16.mxu0 0
        %1091 = vmatpush1.bf16.msra.mxu0 0
        %1092 = vmatprep.subr.bf16.mxu0 0
        %1093 = vmatpush1.bf16.msra.mxu0 0
        %1094 = vmatprep.subr.bf16.mxu0 0
        %1095 = vmatpush1.bf16.msra.mxu0 0
        %1096 = vmatprep.subr.bf16.mxu0 0
        %1097 = vmatpush1.bf16.msra.mxu0 0
        %1098 = vmatprep.subr.bf16.mxu0 0
        %1099 = vmatpush1.bf16.msra.mxu0 0
        %1100 = vmatprep.subr.bf16.mxu0 0
        %1101 = vmatpush1.bf16.msra.mxu0 0
        %1102 = vmatprep.subr.bf16.mxu0 0
        %1103 = vmatpush1.bf16.msra.mxu0 0
        %1104 = vmatprep.subr.bf16.mxu0 0
        %1105 = vmatpush1.bf16.msra.mxu0 0
        %1106 = vmatprep.subr.bf16.mxu0 0
        %1107 = vmatpush1.bf16.msra.mxu0 0
        %1108 = vmatprep.subr.bf16.mxu0 0
        %1109 = vmatpush1.bf16.msra.mxu0 0
        %1110 = vmatprep.subr.bf16.mxu0 0
        %1111 = vmatpush1.bf16.msra.mxu0 0
        %1112 = vmatprep.mubr.bf16.mxu0 0
        %1113 = vmatmul.mubr.bf16.gmra.mrb[0].mxu0 %v1074
        %v1114 = vpop.f32.mrb[0].mxu0
        %v1115 = vadd.f32 0.0, %v1114
        %v1116 = vpop.f32.mrb[0].mxu0
        %v1117 = vpop.f32.mrb[0].mxu0
        %v1118 = vpop.f32.mrb[0].mxu0
        %1119 = vdwg.mxu0
        %v1120 = vpack.c.bf16 %v1115, %v1115
        %v1121 = vld [vmem:[#allocation10] sm:$0xf]
        %v1122 = vld [vmem:[#allocation10 + $0x4] sm:$0xf]
        %v1123 = vld [vmem:[#allocation10 + $0x8] sm:$0xf]
        %v1124 = vld [vmem:[#allocation10 + $0xc] sm:$0xf]
        %1126 = vrot.lane.b32.xlu0 %v1010, 96
        %v1127 = vpop.permute.xlu0 %1126
        %1129 = vrot.lane.b32.xlu0 %v1011, 96
        %v1130 = vpop.permute.xlu0 %1129
        %v1132 = vsel %vm1013, %v1127, 0
        %v1135 = vsel %vm1013, %v1130, 0
        %1137 = vmatprep.subr.bf16.mxu0 0
        %1138 = vmatpush1.bf16.xpose.msra.mxu0 %v1135
        %1139 = vmatprep.subr.bf16.mxu0 0
        %1140 = vmatpush1.bf16.xpose.msra.mxu0 0
        %1141 = vmatprep.subr.bf16.mxu0 0
        %1142 = vmatpush1.bf16.xpose.msra.mxu0 0
        %1143 = vmatprep.subr.bf16.mxu0 0
        %1144 = vmatpush1.bf16.xpose.msra.mxu0 0
        %1145 = vmatprep.subr.bf16.mxu0 0
        %1146 = vmatpush1.bf16.xpose.msra.mxu0 0
        %1147 = vmatprep.subr.bf16.mxu0 0
        %1148 = vmatpush1.bf16.xpose.msra.mxu0 0
        %1149 = vmatprep.subr.bf16.mxu0 0
        %1150 = vmatpush1.bf16.xpose.msra.mxu0 0
        %1151 = vmatprep.subr.bf16.mxu0 0
        %1152 = vmatpush1.bf16.xpose.msra.mxu0 0
        %1153 = vmatprep.subr.bf16.mxu0 0
        %1154 = vmatpush1.bf16.xpose.msra.mxu0 0
        %1155 = vmatprep.subr.bf16.mxu0 0
        %1156 = vmatpush1.bf16.xpose.msra.mxu0 0
        %1157 = vmatprep.subr.bf16.mxu0 0
        %1158 = vmatpush1.bf16.xpose.msra.mxu0 0
        %1159 = vmatprep.subr.bf16.mxu0 0
        %1160 = vmatpush1.bf16.xpose.msra.mxu0 0
        %1161 = vmatprep.subr.bf16.mxu0 0
        %1162 = vmatpush1.bf16.xpose.msra.mxu0 0
        %1163 = vmatprep.subr.bf16.mxu0 0
        %1164 = vmatpush1.bf16.xpose.msra.mxu0 0
        %1165 = vmatprep.subr.bf16.mxu0 0
        %1166 = vmatpush1.bf16.xpose.msra.mxu0 0
        %1167 = vmatprep.subr.bf16.mxu0 0
        %1168 = vmatpush1.bf16.xpose.msra.mxu0 0
        %1169 = vmatprep.mubr.bf16.mxu0 0
        %1170 = vmatmul.mubr.bf16.gmra.mrb[0].mxu0 %v1132
        %v1171 = vpop.f32.mrb[0].mxu0
        %v1172 = vadd.f32 0.0, %v1171
        %v1173 = vpop.f32.mrb[0].mxu0
        %v1174 = vpop.f32.mrb[0].mxu0
        %v1175 = vpop.f32.mrb[0].mxu0
        %1176 = vdwg.mxu0
        %v1177 = vsel %vm1060, %v1172, -inf
        %1178 = vmax.xlane.f32.xlu0 %v1177
        %v1179 = vpop.xlane.xlu0 %1178
        %v1180 = vsub.f32 %v1172, %v1179
        %v1181 = vmul.f32 %v1180, 1.442695
        %v1182 = vpow.pop %v1181
        %v1183 = vsel %vm1060, %v1182, 0.0
        %1184 = vadd.xlane.f32.xlu0 %v1183
        %v1185 = vpop.xlane.xlu0 %1184
        %v1186 = vrcp.pop %v1185
        %v1187 = vmul.f32 %v1182, %v1186
        %v1188 = vpack.c.bf16 %v1187, %v1187
        %1190 = vrot.lane.b32.xlu0 %v1012, 96
        %v1191 = vpop.permute.xlu0 %1190
        %v1193 = vsel %vm1060, %v1188, 0
        %v1196 = vsel %vm1076, %v1191, 0
        %1198 = vmatprep.subr.bf16.mxu0 0
        %1199 = vmatpush1.bf16.msra.mxu0 %v1196
        %1200 = vmatprep.subr.bf16.mxu0 0
        %1201 = vmatpush1.bf16.msra.mxu0 0
        %1202 = vmatprep.subr.bf16.mxu0 0
        %1203 = vmatpush1.bf16.msra.mxu0 0
        %1204 = vmatprep.subr.bf16.mxu0 0
        %1205 = vmatpush1.bf16.msra.mxu0 0
        %1206 = vmatprep.subr.bf16.mxu0 0
        %1207 = vmatpush1.bf16.msra.mxu0 0
        %1208 = vmatprep.subr.bf16.mxu0 0
        %1209 = vmatpush1.bf16.msra.mxu0 0
        %1210 = vmatprep.subr.bf16.mxu0 0
        %1211 = vmatpush1.bf16.msra.mxu0 0
        %1212 = vmatprep.subr.bf16.mxu0 0
        %1213 = vmatpush1.bf16.msra.mxu0 0
        %1214 = vmatprep.subr.bf16.mxu0 0
        %1215 = vmatpush1.bf16.msra.mxu0 0
        %1216 = vmatprep.subr.bf16.mxu0 0
        %1217 = vmatpush1.bf16.msra.mxu0 0
        %1218 = vmatprep.subr.bf16.mxu0 0
        %1219 = vmatpush1.bf16.msra.mxu0 0
        %1220 = vmatprep.subr.bf16.mxu0 0
        %1221 = vmatpush1.bf16.msra.mxu0 0
        %1222 = vmatprep.subr.bf16.mxu0 0
        %1223 = vmatpush1.bf16.msra.mxu0 0
        %1224 = vmatprep.subr.bf16.mxu0 0
        %1225 = vmatpush1.bf16.msra.mxu0 0
        %1226 = vmatprep.subr.bf16.mxu0 0
        %1227 = vmatpush1.bf16.msra.mxu0 0
        %1228 = vmatprep.subr.bf16.mxu0 0
        %1229 = vmatpush1.bf16.msra.mxu0 0
        %1230 = vmatprep.mubr.bf16.mxu0 0
        %1231 = vmatmul.mubr.bf16.gmra.mrb[0].mxu0 %v1193
        %v1232 = vpop.f32.mrb[0].mxu0
        %v1233 = vadd.f32 0.0, %v1232
        %v1234 = vpop.f32.mrb[0].mxu0
        %v1235 = vpop.f32.mrb[0].mxu0
        %v1236 = vpop.f32.mrb[0].mxu0
        %1237 = vdwg.mxu0
        %v1238 = vpack.c.bf16 %v1233, %v1233
        %v1239 = vld [vmem:[#allocation10 + $0x10] sm:$0xf]
        %v1240 = vld [vmem:[#allocation10 + $0x14] sm:$0xf]
        %v1241 = vld [vmem:[#allocation10 + $0x18] sm:$0xf]
        %v1242 = vld [vmem:[#allocation10 + $0x1c] sm:$0xf]
        %v1247 = vunpack.c.l.b16 %v1239
        %v1248 = vunpack.c.l.b16 %v1240
        %v1249 = vunpack.c.l.b16 %v1241
        %v1250 = vunpack.c.l.b16 %v1242
        %v1251 = vpack.c.b16 %v1248, %v1247
        %v1252 = vpack.c.b16 %v1250, %v1249
        %v1256 = vsel %vm1013, %v1238, 0
        %1258 = vmatprep.subr.bf16.mxu0 0
        %1259 = vmatpush1.bf16.msra.mxu0 %v1251
        %1260 = vmatprep.subr.bf16.mxu0 0
        %1261 = vmatpush1.bf16.msra.mxu0 %v1252
        %1262 = vmatprep.subr.bf16.mxu0 0
        %1263 = vmatpush1.bf16.msra.mxu0 0
        %1264 = vmatprep.subr.bf16.mxu0 0
        %1265 = vmatpush1.bf16.msra.mxu0 0
        %1266 = vmatprep.subr.bf16.mxu0 0
        %1267 = vmatpush1.bf16.msra.mxu0 0
        %1268 = vmatprep.subr.bf16.mxu0 0
        %1269 = vmatpush1.bf16.msra.mxu0 0
        %1270 = vmatprep.subr.bf16.mxu0 0
        %1271 = vmatpush1.bf16.msra.mxu0 0
        %1272 = vmatprep.subr.bf16.mxu0 0
        %1273 = vmatpush1.bf16.msra.mxu0 0
        %1274 = vmatprep.subr.bf16.mxu0 0
        %1275 = vmatpush1.bf16.msra.mxu0 0
        %1276 = vmatprep.subr.bf16.mxu0 0
        %1277 = vmatpush1.bf16.msra.mxu0 0
        %1278 = vmatprep.subr.bf16.mxu0 0
        %1279 = vmatpush1.bf16.msra.mxu0 0
        %1280 = vmatprep.subr.bf16.mxu0 0
        %1281 = vmatpush1.bf16.msra.mxu0 0
        %1282 = vmatprep.subr.bf16.mxu0 0
        %1283 = vmatpush1.bf16.msra.mxu0 0
        %1284 = vmatprep.subr.bf16.mxu0 0
        %1285 = vmatpush1.bf16.msra.mxu0 0
        %1286 = vmatprep.subr.bf16.mxu0 0
        %1287 = vmatpush1.bf16.msra.mxu0 0
        %1288 = vmatprep.subr.bf16.mxu0 0
        %1289 = vmatpush1.bf16.msra.mxu0 0
        %1290 = vmatprep.mubr.bf16.mxu0 0
        %1291 = vmatmul.mubr.bf16.gmra.mrb[0].mxu0 %v1256
        %v1292 = vpop.f32.mrb[0].mxu0
        %v1293 = vadd.f32 0.0, %v1292
        %v1294 = vpop.f32.mrb[0].mxu0
        %v1295 = vpop.f32.mrb[0].mxu0
        %v1296 = vpop.f32.mrb[0].mxu0
        %1297 = vdwg.mxu0
        %v1302 = vunpack.c.l.b16 %v1121
        %v1303 = vunpack.c.l.b16 %v1122
        %v1304 = vunpack.c.l.b16 %v1123
        %v1305 = vunpack.c.l.b16 %v1124
        %v1306 = vpack.c.b16 %v1303, %v1302
        %v1307 = vpack.c.b16 %v1305, %v1304
        %v1311 = vsel %vm1013, %v1120, 0
        %1313 = vmatprep.subr.bf16.mxu0 0
        %1314 = vmatpush1.bf16.msra.mxu0 %v1306
        %1315 = vmatprep.subr.bf16.mxu0 0
        %1316 = vmatpush1.bf16.msra.mxu0 %v1307
        %1317 = vmatprep.subr.bf16.mxu0 0
        %1318 = vmatpush1.bf16.msra.mxu0 0
        %1319 = vmatprep.subr.bf16.mxu0 0
        %1320 = vmatpush1.bf16.msra.mxu0 0
        %1321 = vmatprep.subr.bf16.mxu0 0
        %1322 = vmatpush1.bf16.msra.mxu0 0
        %1323 = vmatprep.subr.bf16.mxu0 0
        %1324 = vmatpush1.bf16.msra.mxu0 0
        %1325 = vmatprep.subr.bf16.mxu0 0
        %1326 = vmatpush1.bf16.msra.mxu0 0
        %1327 = vmatprep.subr.bf16.mxu0 0
        %1328 = vmatpush1.bf16.msra.mxu0 0
        %1329 = vmatprep.subr.bf16.mxu0 0
        %1330 = vmatpush1.bf16.msra.mxu0 0
        %1331 = vmatprep.subr.bf16.mxu0 0
        %1332 = vmatpush1.bf16.msra.mxu0 0
        %1333 = vmatprep.subr.bf16.mxu0 0
        %1334 = vmatpush1.bf16.msra.mxu0 0
        %1335 = vmatprep.subr.bf16.mxu0 0
        %1336 = vmatpush1.bf16.msra.mxu0 0
        %1337 = vmatprep.subr.bf16.mxu0 0
        %1338 = vmatpush1.bf16.msra.mxu0 0
        %1339 = vmatprep.subr.bf16.mxu0 0
        %1340 = vmatpush1.bf16.msra.mxu0 0
        %1341 = vmatprep.subr.bf16.mxu0 0
        %1342 = vmatpush1.bf16.msra.mxu0 0
        %1343 = vmatprep.subr.bf16.mxu0 0
        %1344 = vmatpush1.bf16.msra.mxu0 0
        %1345 = vmatprep.mubr.bf16.mxu0 0
        %1346 = vmatmul.mubr.bf16.gmra.mrb[0].mxu0 %v1311
        %v1347 = vpop.f32.mrb[0].mxu0
        %v1348 = vadd.f32 %v1293, %v1347
        %v1349 = vpop.f32.mrb[0].mxu0
        %v1350 = vpop.f32.mrb[0].mxu0
        %v1351 = vpop.f32.mrb[0].mxu0
        %1352 = vdwg.mxu0
        %1353 = vrot.lane.b32.xlu0 %v1010, 64
        %v1354 = vpop.permute.xlu0 %1353
        %1355 = vrot.lane.b32.xlu0 %v1011, 64
        %v1356 = vpop.permute.xlu0 %1355
        %v1358 = vsel %vm1013, %v1354, 0
        %v1361 = vsel %vm1013, %v1356, 0
        %1363 = vmatprep.subr.bf16.mxu0 0
        %1364 = vmatpush1.bf16.xpose.msra.mxu0 %v1361
        %1365 = vmatprep.subr.bf16.mxu0 0
        %1366 = vmatpush1.bf16.xpose.msra.mxu0 0
        %1367 = vmatprep.subr.bf16.mxu0 0
        %1368 = vmatpush1.bf16.xpose.msra.mxu0 0
        %1369 = vmatprep.subr.bf16.mxu0 0
        %1370 = vmatpush1.bf16.xpose.msra.mxu0 0
        %1371 = vmatprep.subr.bf16.mxu0 0
        %1372 = vmatpush1.bf16.xpose.msra.mxu0 0
        %1373 = vmatprep.subr.bf16.mxu0 0
        %1374 = vmatpush1.bf16.xpose.msra.mxu0 0
        %1375 = vmatprep.subr.bf16.mxu0 0
        %1376 = vmatpush1.bf16.xpose.msra.mxu0 0
        %1377 = vmatprep.subr.bf16.mxu0 0
        %1378 = vmatpush1.bf16.xpose.msra.mxu0 0
        %1379 = vmatprep.subr.bf16.mxu0 0
        %1380 = vmatpush1.bf16.xpose.msra.mxu0 0
        %1381 = vmatprep.subr.bf16.mxu0 0
        %1382 = vmatpush1.bf16.xpose.msra.mxu0 0
        %1383 = vmatprep.subr.bf16.mxu0 0
        %1384 = vmatpush1.bf16.xpose.msra.mxu0 0
        %1385 = vmatprep.subr.bf16.mxu0 0
        %1386 = vmatpush1.bf16.xpose.msra.mxu0 0
        %1387 = vmatprep.subr.bf16.mxu0 0
        %1388 = vmatpush1.bf16.xpose.msra.mxu0 0
        %1389 = vmatprep.subr.bf16.mxu0 0
        %1390 = vmatpush1.bf16.xpose.msra.mxu0 0
        %1391 = vmatprep.subr.bf16.mxu0 0
        %1392 = vmatpush1.bf16.xpose.msra.mxu0 0
        %1393 = vmatprep.subr.bf16.mxu0 0
        %1394 = vmatpush1.bf16.xpose.msra.mxu0 0
        %1395 = vmatprep.mubr.bf16.mxu0 0
        %1396 = vmatmul.mubr.bf16.gmra.mrb[0].mxu0 %v1358
        %v1397 = vpop.f32.mrb[0].mxu0
        %v1398 = vadd.f32 0.0, %v1397
        %v1399 = vpop.f32.mrb[0].mxu0
        %v1400 = vpop.f32.mrb[0].mxu0
        %v1401 = vpop.f32.mrb[0].mxu0
        %1402 = vdwg.mxu0
        %v1403 = vsel %vm1060, %v1398, -inf
        %1404 = vmax.xlane.f32.xlu0 %v1403
        %v1405 = vpop.xlane.xlu0 %1404
        %v1406 = vsub.f32 %v1398, %v1405
        %v1407 = vmul.f32 %v1406, 1.442695
        %v1408 = vpow.pop %v1407
        %v1409 = vsel %vm1060, %v1408, 0.0
        %1410 = vadd.xlane.f32.xlu0 %v1409
        %v1411 = vpop.xlane.xlu0 %1410
        %v1412 = vrcp.pop %v1411
        %v1413 = vmul.f32 %v1408, %v1412
        %v1414 = vpack.c.bf16 %v1413, %v1413
        %1415 = vrot.lane.b32.xlu0 %v1012, 64
        %v1416 = vpop.permute.xlu0 %1415
        %v1418 = vsel %vm1060, %v1414, 0
        %v1421 = vsel %vm1076, %v1416, 0
        %1423 = vmatprep.subr.bf16.mxu0 0
        %1424 = vmatpush1.bf16.msra.mxu0 %v1421
        %1425 = vmatprep.subr.bf16.mxu0 0
        %1426 = vmatpush1.bf16.msra.mxu0 0
        %1427 = vmatprep.subr.bf16.mxu0 0
        %1428 = vmatpush1.bf16.msra.mxu0 0
        %1429 = vmatprep.subr.bf16.mxu0 0
        %1430 = vmatpush1.bf16.msra.mxu0 0
        %1431 = vmatprep.subr.bf16.mxu0 0
        %1432 = vmatpush1.bf16.msra.mxu0 0
        %1433 = vmatprep.subr.bf16.mxu0 0
        %1434 = vmatpush1.bf16.msra.mxu0 0
        %1435 = vmatprep.subr.bf16.mxu0 0
        %1436 = vmatpush1.bf16.msra.mxu0 0
        %1437 = vmatprep.subr.bf16.mxu0 0
        %1438 = vmatpush1.bf16.msra.mxu0 0
        %1439 = vmatprep.subr.bf16.mxu0 0
        %1440 = vmatpush1.bf16.msra.mxu0 0
        %1441 = vmatprep.subr.bf16.mxu0 0
        %1442 = vmatpush1.bf16.msra.mxu0 0
        %1443 = vmatprep.subr.bf16.mxu0 0
        %1444 = vmatpush1.bf16.msra.mxu0 0
        %1445 = vmatprep.subr.bf16.mxu0 0
        %1446 = vmatpush1.bf16.msra.mxu0 0
        %1447 = vmatprep.subr.bf16.mxu0 0
        %1448 = vmatpush1.bf16.msra.mxu0 0
        %1449 = vmatprep.subr.bf16.mxu0 0
        %1450 = vmatpush1.bf16.msra.mxu0 0
        %1451 = vmatprep.subr.bf16.mxu0 0
        %1452 = vmatpush1.bf16.msra.mxu0 0
        %1453 = vmatprep.subr.bf16.mxu0 0
        %1454 = vmatpush1.bf16.msra.mxu0 0
        %1455 = vmatprep.mubr.bf16.mxu0 0
        %1456 = vmatmul.mubr.bf16.gmra.mrb[0].mxu0 %v1418
        %v1457 = vpop.f32.mrb[0].mxu0
        %v1458 = vadd.f32 0.0, %v1457
        %v1459 = vpop.f32.mrb[0].mxu0
        %v1460 = vpop.f32.mrb[0].mxu0
        %v1461 = vpop.f32.mrb[0].mxu0
        %1462 = vdwg.mxu0
        %v1463 = vpack.c.bf16 %v1458, %v1458
        %v1464 = vld [vmem:[#allocation10 + $0x20] sm:$0xf]
        %v1465 = vld [vmem:[#allocation10 + $0x24] sm:$0xf]
        %v1466 = vld [vmem:[#allocation10 + $0x28] sm:$0xf]
        %v1467 = vld [vmem:[#allocation10 + $0x2c] sm:$0xf]
        %v1472 = vunpack.c.l.b16 %v1464
        %v1473 = vunpack.c.l.b16 %v1465
        %v1474 = vunpack.c.l.b16 %v1466
        %v1475 = vunpack.c.l.b16 %v1467
        %v1476 = vpack.c.b16 %v1473, %v1472
        %v1477 = vpack.c.b16 %v1475, %v1474
        %v1481 = vsel %vm1013, %v1463, 0
        %1483 = vmatprep.subr.bf16.mxu0 0
        %1484 = vmatpush1.bf16.msra.mxu0 %v1476
        %1485 = vmatprep.subr.bf16.mxu0 0
        %1486 = vmatpush1.bf16.msra.mxu0 %v1477
        %1487 = vmatprep.subr.bf16.mxu0 0
        %1488 = vmatpush1.bf16.msra.mxu0 0
        %1489 = vmatprep.subr.bf16.mxu0 0
        %1490 = vmatpush1.bf16.msra.mxu0 0
        %1491 = vmatprep.subr.bf16.mxu0 0
        %1492 = vmatpush1.bf16.msra.mxu0 0
        %1493 = vmatprep.subr.bf16.mxu0 0
        %1494 = vmatpush1.bf16.msra.mxu0 0
        %1495 = vmatprep.subr.bf16.mxu0 0
        %1496 = vmatpush1.bf16.msra.mxu0 0
        %1497 = vmatprep.subr.bf16.mxu0 0
        %1498 = vmatpush1.bf16.msra.mxu0 0
        %1499 = vmatprep.subr.bf16.mxu0 0
        %1500 = vmatpush1.bf16.msra.mxu0 0
        %1501 = vmatprep.subr.bf16.mxu0 0
        %1502 = vmatpush1.bf16.msra.mxu0 0
        %1503 = vmatprep.subr.bf16.mxu0 0
        %1504 = vmatpush1.bf16.msra.mxu0 0
        %1505 = vmatprep.subr.bf16.mxu0 0
        %1506 = vmatpush1.bf16.msra.mxu0 0
        %1507 = vmatprep.subr.bf16.mxu0 0
        %1508 = vmatpush1.bf16.msra.mxu0 0
        %1509 = vmatprep.subr.bf16.mxu0 0
        %1510 = vmatpush1.bf16.msra.mxu0 0
        %1511 = vmatprep.subr.bf16.mxu0 0
        %1512 = vmatpush1.bf16.msra.mxu0 0
        %1513 = vmatprep.subr.bf16.mxu0 0
        %1514 = vmatpush1.bf16.msra.mxu0 0
        %1515 = vmatprep.mubr.bf16.mxu0 0
        %1516 = vmatmul.mubr.bf16.gmra.mrb[0].mxu0 %v1481
        %v1517 = vpop.f32.mrb[0].mxu0
        %v1518 = vadd.f32 0.0, %v1517
        %v1519 = vpop.f32.mrb[0].mxu0
        %v1520 = vpop.f32.mrb[0].mxu0
        %v1521 = vpop.f32.mrb[0].mxu0
        %1522 = vdwg.mxu0
        %v1523 = vadd.f32 %v1348, %v1518
        %1524 = vrot.lane.b32.xlu0 %v1010, 32
        %v1525 = vpop.permute.xlu0 %1524
        %1526 = vrot.lane.b32.xlu0 %v1011, 32
        %v1527 = vpop.permute.xlu0 %1526
        %v1529 = vsel %vm1013, %v1525, 0
        %v1532 = vsel %vm1013, %v1527, 0
        %1534 = vmatprep.subr.bf16.mxu0 0
        %1535 = vmatpush1.bf16.xpose.msra.mxu0 %v1532
        %1536 = vmatprep.subr.bf16.mxu0 0
        %1537 = vmatpush1.bf16.xpose.msra.mxu0 0
        %1538 = vmatprep.subr.bf16.mxu0 0
        %1539 = vmatpush1.bf16.xpose.msra.mxu0 0
        %1540 = vmatprep.subr.bf16.mxu0 0
        %1541 = vmatpush1.bf16.xpose.msra.mxu0 0
        %1542 = vmatprep.subr.bf16.mxu0 0
        %1543 = vmatpush1.bf16.xpose.msra.mxu0 0
        %1544 = vmatprep.subr.bf16.mxu0 0
        %1545 = vmatpush1.bf16.xpose.msra.mxu0 0
        %1546 = vmatprep.subr.bf16.mxu0 0
        %1547 = vmatpush1.bf16.xpose.msra.mxu0 0
        %1548 = vmatprep.subr.bf16.mxu0 0
        %1549 = vmatpush1.bf16.xpose.msra.mxu0 0
        %1550 = vmatprep.subr.bf16.mxu0 0
        %1551 = vmatpush1.bf16.xpose.msra.mxu0 0
        %1552 = vmatprep.subr.bf16.mxu0 0
        %1553 = vmatpush1.bf16.xpose.msra.mxu0 0
        %1554 = vmatprep.subr.bf16.mxu0 0
        %1555 = vmatpush1.bf16.xpose.msra.mxu0 0
        %1556 = vmatprep.subr.bf16.mxu0 0
        %1557 = vmatpush1.bf16.xpose.msra.mxu0 0
        %1558 = vmatprep.subr.bf16.mxu0 0
        %1559 = vmatpush1.bf16.xpose.msra.mxu0 0
        %1560 = vmatprep.subr.bf16.mxu0 0
        %1561 = vmatpush1.bf16.xpose.msra.mxu0 0
        %1562 = vmatprep.subr.bf16.mxu0 0
        %1563 = vmatpush1.bf16.xpose.msra.mxu0 0
        %1564 = vmatprep.subr.bf16.mxu0 0
        %1565 = vmatpush1.bf16.xpose.msra.mxu0 0
        %1566 = vmatprep.mubr.bf16.mxu0 0
        %1567 = vmatmul.mubr.bf16.gmra.mrb[0].mxu0 %v1529
        %v1568 = vpop.f32.mrb[0].mxu0
        %v1569 = vadd.f32 0.0, %v1568
        %v1570 = vpop.f32.mrb[0].mxu0
        %v1571 = vpop.f32.mrb[0].mxu0
        %v1572 = vpop.f32.mrb[0].mxu0
        %1573 = vdwg.mxu0
        %v1574 = vsel %vm1060, %v1569, -inf
        %1575 = vmax.xlane.f32.xlu0 %v1574
        %v1576 = vpop.xlane.xlu0 %1575
        %v1577 = vsub.f32 %v1569, %v1576
        %v1578 = vmul.f32 %v1577, 1.442695
        %v1579 = vpow.pop %v1578
        %v1580 = vsel %vm1060, %v1579, 0.0
        %1581 = vadd.xlane.f32.xlu0 %v1580
        %v1582 = vpop.xlane.xlu0 %1581
        %v1583 = vrcp.pop %v1582
        %v1584 = vmul.f32 %v1579, %v1583
        %v1585 = vpack.c.bf16 %v1584, %v1584
        %1586 = vrot.lane.b32.xlu0 %v1012, 32
        %v1587 = vpop.permute.xlu0 %1586
        %v1589 = vsel %vm1060, %v1585, 0
        %v1592 = vsel %vm1076, %v1587, 0
        %1594 = vmatprep.subr.bf16.mxu0 0
        %1595 = vmatpush1.bf16.msra.mxu0 %v1592
        %1596 = vmatprep.subr.bf16.mxu0 0
        %1597 = vmatpush1.bf16.msra.mxu0 0
        %1598 = vmatprep.subr.bf16.mxu0 0
        %1599 = vmatpush1.bf16.msra.mxu0 0
        %1600 = vmatprep.subr.bf16.mxu0 0
        %1601 = vmatpush1.bf16.msra.mxu0 0
        %1602 = vmatprep.subr.bf16.mxu0 0
        %1603 = vmatpush1.bf16.msra.mxu0 0
        %1604 = vmatprep.subr.bf16.mxu0 0
        %1605 = vmatpush1.bf16.msra.mxu0 0
        %1606 = vmatprep.subr.bf16.mxu0 0
        %1607 = vmatpush1.bf16.msra.mxu0 0
        %1608 = vmatprep.subr.bf16.mxu0 0
        %1609 = vmatpush1.bf16.msra.mxu0 0
        %1610 = vmatprep.subr.bf16.mxu0 0
        %1611 = vmatpush1.bf16.msra.mxu0 0
        %1612 = vmatprep.subr.bf16.mxu0 0
        %1613 = vmatpush1.bf16.msra.mxu0 0
        %1614 = vmatprep.subr.bf16.mxu0 0
        %1615 = vmatpush1.bf16.msra.mxu0 0
        %1616 = vmatprep.subr.bf16.mxu0 0
        %1617 = vmatpush1.bf16.msra.mxu0 0
        %1618 = vmatprep.subr.bf16.mxu0 0
        %1619 = vmatpush1.bf16.msra.mxu0 0
        %1620 = vmatprep.subr.bf16.mxu0 0
        %1621 = vmatpush1.bf16.msra.mxu0 0
        %1622 = vmatprep.subr.bf16.mxu0 0
        %1623 = vmatpush1.bf16.msra.mxu0 0
        %1624 = vmatprep.subr.bf16.mxu0 0
        %1625 = vmatpush1.bf16.msra.mxu0 0
        %1626 = vmatprep.mubr.bf16.mxu0 0
        %1627 = vmatmul.mubr.bf16.gmra.mrb[0].mxu0 %v1589
        %v1628 = vpop.f32.mrb[0].mxu0
        %v1629 = vadd.f32 0.0, %v1628
        %v1630 = vpop.f32.mrb[0].mxu0
        %v1631 = vpop.f32.mrb[0].mxu0
        %v1632 = vpop.f32.mrb[0].mxu0
        %1633 = vdwg.mxu0
        %v1634 = vpack.c.bf16 %v1629, %v1629
        %v1635 = vld [vmem:[#allocation10 + $0x30] sm:$0xf]
        %v1636 = vld [vmem:[#allocation10 + $0x34] sm:$0xf]
        %v1637 = vld [vmem:[#allocation10 + $0x38] sm:$0xf]
        %v1638 = vld [vmem:[#allocation10 + $0x3c] sm:$0xf]
        %v1643 = vunpack.c.l.b16 %v1635
        %v1644 = vunpack.c.l.b16 %v1636
        %v1645 = vunpack.c.l.b16 %v1637
        %v1646 = vunpack.c.l.b16 %v1638
        %v1647 = vpack.c.b16 %v1644, %v1643
        %v1648 = vpack.c.b16 %v1646, %v1645
        %v1652 = vsel %vm1013, %v1634, 0
        %1654 = vmatprep.subr.bf16.mxu0 0
        %1655 = vmatpush1.bf16.msra.mxu0 %v1647
        %1656 = vmatprep.subr.bf16.mxu0 0
        %1657 = vmatpush1.bf16.msra.mxu0 %v1648
        %1658 = vmatprep.subr.bf16.mxu0 0
        %1659 = vmatpush1.bf16.msra.mxu0 0
        %1660 = vmatprep.subr.bf16.mxu0 0
        %1661 = vmatpush1.bf16.msra.mxu0 0
        %1662 = vmatprep.subr.bf16.mxu0 0
        %1663 = vmatpush1.bf16.msra.mxu0 0
        %1664 = vmatprep.subr.bf16.mxu0 0
        %1665 = vmatpush1.bf16.msra.mxu0 0
        %1666 = vmatprep.subr.bf16.mxu0 0
        %1667 = vmatpush1.bf16.msra.mxu0 0
        %1668 = vmatprep.subr.bf16.mxu0 0
        %1669 = vmatpush1.bf16.msra.mxu0 0
        %1670 = vmatprep.subr.bf16.mxu0 0
        %1671 = vmatpush1.bf16.msra.mxu0 0
        %1672 = vmatprep.subr.bf16.mxu0 0
        %1673 = vmatpush1.bf16.msra.mxu0 0
        %1674 = vmatprep.subr.bf16.mxu0 0
        %1675 = vmatpush1.bf16.msra.mxu0 0
        %1676 = vmatprep.subr.bf16.mxu0 0
        %1677 = vmatpush1.bf16.msra.mxu0 0
        %1678 = vmatprep.subr.bf16.mxu0 0
        %1679 = vmatpush1.bf16.msra.mxu0 0
        %1680 = vmatprep.subr.bf16.mxu0 0
        %1681 = vmatpush1.bf16.msra.mxu0 0
        %1682 = vmatprep.subr.bf16.mxu0 0
        %1683 = vmatpush1.bf16.msra.mxu0 0
        %1684 = vmatprep.subr.bf16.mxu0 0
        %1685 = vmatpush1.bf16.msra.mxu0 0
        %1686 = vmatprep.mubr.bf16.mxu0 0
        %1687 = vmatmul.mubr.bf16.gmra.mrb[0].mxu0 %v1652
        %v1688 = vpop.f32.mrb[0].mxu0
        %v1689 = vadd.f32 0.0, %v1688
        %v1690 = vpop.f32.mrb[0].mxu0
        %v1691 = vpop.f32.mrb[0].mxu0
        %v1692 = vpop.f32.mrb[0].mxu0
        %1693 = vdwg.mxu0
        %v1694 = vadd.f32 %v1523, %v1689
        %v1695 = vld [vmem:[%s9] sm:$0x1]
        %v1697 = vlaneseq
        %v1698 = vshrl.u32 %v1697, 7
        %v1699 = vsub.s32 0, %v1698
        %v1700 = vrot.slane %v1695, %v1699
        %v1702 = vadd.f32 %v1694, %v1700
        %v1703 = vadd.f32 %v747, %v1702
        %1704 = vadd.xlane.f32.xlu0 %v1703
        %v1705 = vpop.xlane.xlu0 %1704
        %v1706 = vmul.f32 %v1705, %v722
        %v1707 = vsub.f32 %v1703, %v1706
        %v1708 = vmul.f32 %v1707, %v1707
        %1709 = vadd.xlane.f32.xlu0 %v1708
        %v1710 = vpop.xlane.xlu0 %1709
        %v1711 = vmul.f32 %v1710, %v722
        %v1712 = vadd.f32 %v1711, 1e-05
        %v1713 = vrsqrt.pop %v1712
        %v1714 = vmul.f32 %v1707, %v1713
        %v1715 = vld [vmem:[%s10] sm:$0x1]
        %v1717 = vlaneseq
        %v1718 = vshrl.u32 %v1717, 7
        %v1719 = vsub.s32 0, %v1718
        %v1720 = vrot.slane %v1715, %v1719
        %v1722 = vmul.f32 %v1714, %v1720
        %v1723 = vld [vmem:[%s11] sm:$0x1]
        %v1725 = vlaneseq
        %v1726 = vshrl.u32 %v1725, 7
        %v1727 = vsub.s32 0, %v1726
        %v1728 = vrot.slane %v1723, %v1727
        %v1730 = vadd.f32 %v1722, %v1728
        %v1731 = vpack.c.bf16 %v1730, %v1730
        %v1732 = vld [vmem:[#allocation11] sm:$0xff]
        %v1733 = vld [vmem:[#allocation11 + $0x8] sm:$0xff]
        %v1734 = vld [vmem:[#allocation11 + $0x10] sm:$0xff]
        %v1735 = vld [vmem:[#allocation11 + $0x18] sm:$0xff]
        %v1736 = vld [vmem:[#allocation11 + $0x20] sm:$0xff]
        %v1737 = vld [vmem:[#allocation11 + $0x28] sm:$0xff]
        %v1738 = vld [vmem:[#allocation11 + $0x30] sm:$0xff]
        %v1739 = vld [vmem:[#allocation11 + $0x38] sm:$0xff]
        %v1740 = vld [vmem:[#allocation11 + $0x40] sm:$0xff]
        %v1741 = vld [vmem:[#allocation11 + $0x48] sm:$0xff]
        %v1742 = vld [vmem:[#allocation11 + $0x50] sm:$0xff]
        %v1743 = vld [vmem:[#allocation11 + $0x58] sm:$0xff]
        %v1744 = vld [vmem:[#allocation11 + $0x60] sm:$0xff]
        %v1745 = vld [vmem:[#allocation11 + $0x68] sm:$0xff]
        %v1746 = vld [vmem:[#allocation11 + $0x70] sm:$0xff]
        %v1747 = vld [vmem:[#allocation11 + $0x78] sm:$0xff]
        %v1748 = vld [vmem:[%s13] sm:$0x3]
        %v1750 = vlaneseq
        %v1751 = vshrl.u32 %v1750, 7
        %v1752 = vsub.s32 0, %v1751
        %v1753 = vrot.slane %v1748, %v1752
        %v1754 = vlaneseq
        %v1755 = vshrl.u32 %v1754, 7
        %v1756 = vsub.s32 1, %v1755
        %v1757 = vrot.slane %v1748, %v1756
        %v1776 = vunpack.c.l.b16 %v1732
        %v1777 = vunpack.c.h.b16 %v1732
        %v1778 = vunpack.c.l.b16 %v1733
        %v1779 = vunpack.c.h.b16 %v1733
        %v1780 = vunpack.c.l.b16 %v1734
        %v1781 = vunpack.c.h.b16 %v1734
        %v1782 = vunpack.c.l.b16 %v1735
        %v1783 = vunpack.c.h.b16 %v1735
        %v1784 = vunpack.c.l.b16 %v1736
        %v1785 = vunpack.c.h.b16 %v1736
        %v1786 = vunpack.c.l.b16 %v1737
        %v1787 = vunpack.c.h.b16 %v1737
        %v1788 = vunpack.c.l.b16 %v1738
        %v1789 = vunpack.c.h.b16 %v1738
        %v1790 = vunpack.c.l.b16 %v1739
        %v1791 = vunpack.c.h.b16 %v1739
        %v1792 = vunpack.c.l.b16 %v1740
        %v1793 = vunpack.c.h.b16 %v1740
        %v1794 = vunpack.c.l.b16 %v1741
        %v1795 = vunpack.c.h.b16 %v1741
        %v1796 = vunpack.c.l.b16 %v1742
        %v1797 = vunpack.c.h.b16 %v1742
        %v1798 = vunpack.c.l.b16 %v1743
        %v1799 = vunpack.c.h.b16 %v1743
        %v1800 = vunpack.c.l.b16 %v1744
        %v1801 = vunpack.c.h.b16 %v1744
        %v1802 = vunpack.c.l.b16 %v1745
        %v1803 = vunpack.c.h.b16 %v1745
        %v1804 = vunpack.c.l.b16 %v1746
        %v1805 = vunpack.c.h.b16 %v1746
        %v1806 = vunpack.c.l.b16 %v1747
        %v1807 = vunpack.c.h.b16 %v1747
        %v1808 = vpack.c.b16 %v1778, %v1776
        %v1809 = vpack.c.b16 %v1779, %v1777
        %v1810 = vpack.c.b16 %v1782, %v1780
        %v1811 = vpack.c.b16 %v1783, %v1781
        %v1812 = vpack.c.b16 %v1786, %v1784
        %v1813 = vpack.c.b16 %v1787, %v1785
        %v1814 = vpack.c.b16 %v1790, %v1788
        %v1815 = vpack.c.b16 %v1791, %v1789
        %v1816 = vpack.c.b16 %v1794, %v1792
        %v1817 = vpack.c.b16 %v1795, %v1793
        %v1818 = vpack.c.b16 %v1798, %v1796
        %v1819 = vpack.c.b16 %v1799, %v1797
        %v1820 = vpack.c.b16 %v1802, %v1800
        %v1821 = vpack.c.b16 %v1803, %v1801
        %v1822 = vpack.c.b16 %v1806, %v1804
        %v1823 = vpack.c.b16 %v1807, %v1805
        %1840 = vmatprep.subr.bf16.mxu0 %v1809
        %1841 = vmatpush1.bf16.msra.mxu0 %v1808
        %1842 = vmatprep.subr.bf16.mxu0 %v1811
        %1843 = vmatpush1.bf16.msra.mxu0 %v1810
        %1844 = vmatprep.subr.bf16.mxu0 %v1813
        %1845 = vmatpush1.bf16.msra.mxu0 %v1812
        %1846 = vmatprep.subr.bf16.mxu0 %v1815
        %1847 = vmatpush1.bf16.msra.mxu0 %v1814
        %1848 = vmatprep.subr.bf16.mxu0 %v1817
        %1849 = vmatpush1.bf16.msra.mxu0 %v1816
        %1850 = vmatprep.subr.bf16.mxu0 %v1819
        %1851 = vmatpush1.bf16.msra.mxu0 %v1818
        %1852 = vmatprep.subr.bf16.mxu0 %v1821
        %1853 = vmatpush1.bf16.msra.mxu0 %v1820
        %1854 = vmatprep.subr.bf16.mxu0 %v1823
        %1855 = vmatpush1.bf16.msra.mxu0 %v1822
        %1856 = vmatprep.subr.bf16.mxu0 0
        %1857 = vmatpush1.bf16.msra.mxu0 0
        %1858 = vmatprep.subr.bf16.mxu0 0
        %1859 = vmatpush1.bf16.msra.mxu0 0
        %1860 = vmatprep.subr.bf16.mxu0 0
        %1861 = vmatpush1.bf16.msra.mxu0 0
        %1862 = vmatprep.subr.bf16.mxu0 0
        %1863 = vmatpush1.bf16.msra.mxu0 0
        %1864 = vmatprep.subr.bf16.mxu0 0
        %1865 = vmatpush1.bf16.msra.mxu0 0
        %1866 = vmatprep.subr.bf16.mxu0 0
        %1867 = vmatpush1.bf16.msra.mxu0 0
        %1868 = vmatprep.subr.bf16.mxu0 0
        %1869 = vmatpush1.bf16.msra.mxu0 0
        %1870 = vmatprep.subr.bf16.mxu0 0
        %1871 = vmatpush1.bf16.msra.mxu0 0
        %1872 = vmatprep.mubr.bf16.mxu0 0
        %1873 = vmatmul.mubr.bf16.gmra.mrb[0].mxu0 %v1731
        %v1874 = vpop.f32.mrb[0].mxu0
        %v1875 = vadd.f32 %v1753, %v1874
        %v1876 = vpop.f32.mrb[0].mxu0
        %v1877 = vadd.f32 %v1757, %v1876
        %v1878 = vpop.f32.mrb[0].mxu0
        %v1879 = vpop.f32.mrb[0].mxu0
        %1880 = vdwg.mxu0
        %v1881 = vmul.f32 %v1875, 0.5
        %v1882 = vmul.f32 %v1877, 0.5
        %v1883 = vmul.f32 %v1875, 0.044715
        %v1884 = vmul.f32 %v1877, 0.044715
        %v1885 = vmul.f32 %v1883, %v1875
        %v1886 = vmul.f32 %v1884, %v1877
        %v1887 = vmul.f32 %v1885, %v1875
        %v1888 = vmul.f32 %v1886, %v1877
        %v1889 = vadd.f32 %v1875, %v1887
        %v1890 = vadd.f32 %v1877, %v1888
        %v1891 = vmul.f32 %v1889, 0.7978846
        %v1892 = vmul.f32 %v1890, 0.7978846
        %v1893 = vtanh.pop %v1891
        %v1894 = vtanh.pop %v1892
        %v1895 = vadd.f32 %v1893, 1.0
        %v1896 = vadd.f32 %v1894, 1.0
        %v1897 = vmul.f32 %v1881, %v1895
        %v1898 = vmul.f32 %v1882, %v1896
        %v1899 = vpack.c.bf16 %v1897, %v1897
        %v1900 = vpack.c.bf16 %v1898, %v1898
        %v1901 = vld [vmem:[#allocation13] sm:$0xf]
        %v1902 = vld [vmem:[#allocation13 + $0x4] sm:$0xf]
        %v1903 = vld [vmem:[#allocation13 + $0x8] sm:$0xf]
        %v1904 = vld [vmem:[#allocation13 + $0xc] sm:$0xf]
        %v1905 = vld [vmem:[#allocation13 + $0x10] sm:$0xf]
        %v1906 = vld [vmem:[#allocation13 + $0x14] sm:$0xf]
        %v1907 = vld [vmem:[#allocation13 + $0x18] sm:$0xf]
        %v1908 = vld [vmem:[#allocation13 + $0x1c] sm:$0xf]
        %v1909 = vld [vmem:[#allocation13 + $0x20] sm:$0xf]
        %v1910 = vld [vmem:[#allocation13 + $0x24] sm:$0xf]
        %v1911 = vld [vmem:[#allocation13 + $0x28] sm:$0xf]
        %v1912 = vld [vmem:[#allocation13 + $0x2c] sm:$0xf]
        %v1913 = vld [vmem:[#allocation13 + $0x30] sm:$0xf]
        %v1914 = vld [vmem:[#allocation13 + $0x34] sm:$0xf]
        %v1915 = vld [vmem:[#allocation13 + $0x38] sm:$0xf]
        %v1916 = vld [vmem:[#allocation13 + $0x3c] sm:$0xf]
        %v1917 = vld [vmem:[#allocation13 + $0x40] sm:$0xf]
        %v1918 = vld [vmem:[#allocation13 + $0x44] sm:$0xf]
        %v1919 = vld [vmem:[#allocation13 + $0x48] sm:$0xf]
        %v1920 = vld [vmem:[#allocation13 + $0x4c] sm:$0xf]
        %v1921 = vld [vmem:[#allocation13 + $0x50] sm:$0xf]
        %v1922 = vld [vmem:[#allocation13 + $0x54] sm:$0xf]
        %v1923 = vld [vmem:[#allocation13 + $0x58] sm:$0xf]
        %v1924 = vld [vmem:[#allocation13 + $0x5c] sm:$0xf]
        %v1925 = vld [vmem:[#allocation13 + $0x60] sm:$0xf]
        %v1926 = vld [vmem:[#allocation13 + $0x64] sm:$0xf]
        %v1927 = vld [vmem:[#allocation13 + $0x68] sm:$0xf]
        %v1928 = vld [vmem:[#allocation13 + $0x6c] sm:$0xf]
        %v1929 = vld [vmem:[#allocation13 + $0x70] sm:$0xf]
        %v1930 = vld [vmem:[#allocation13 + $0x74] sm:$0xf]
        %v1931 = vld [vmem:[#allocation13 + $0x78] sm:$0xf]
        %v1932 = vld [vmem:[#allocation13 + $0x7c] sm:$0xf]
        %v1933 = vld [vmem:[%s15] sm:$0x1]
        %v1935 = vlaneseq
        %v1936 = vshrl.u32 %v1935, 7
        %v1937 = vsub.s32 0, %v1936
        %v1938 = vrot.slane %v1933, %v1937
        %v1972 = vunpack.c.l.b16 %v1901
        %v1973 = vunpack.c.l.b16 %v1902
        %v1974 = vunpack.c.l.b16 %v1903
        %v1975 = vunpack.c.l.b16 %v1904
        %v1976 = vunpack.c.l.b16 %v1905
        %v1977 = vunpack.c.l.b16 %v1906
        %v1978 = vunpack.c.l.b16 %v1907
        %v1979 = vunpack.c.l.b16 %v1908
        %v1980 = vunpack.c.l.b16 %v1909
        %v1981 = vunpack.c.l.b16 %v1910
        %v1982 = vunpack.c.l.b16 %v1911
        %v1983 = vunpack.c.l.b16 %v1912
        %v1984 = vunpack.c.l.b16 %v1913
        %v1985 = vunpack.c.l.b16 %v1914
        %v1986 = vunpack.c.l.b16 %v1915
        %v1987 = vunpack.c.l.b16 %v1916
        %v1988 = vunpack.c.l.b16 %v1917
        %v1989 = vunpack.c.l.b16 %v1918
        %v1990 = vunpack.c.l.b16 %v1919
        %v1991 = vunpack.c.l.b16 %v1920
        %v1992 = vunpack.c.l.b16 %v1921
        %v1993 = vunpack.c.l.b16 %v1922
        %v1994 = vunpack.c.l.b16 %v1923
        %v1995 = vunpack.c.l.b16 %v1924
        %v1996 = vunpack.c.l.b16 %v1925
        %v1997 = vunpack.c.l.b16 %v1926
        %v1998 = vunpack.c.l.b16 %v1927
        %v1999 = vunpack.c.l.b16 %v1928
        %v2000 = vunpack.c.l.b16 %v1929
        %v2001 = vunpack.c.l.b16 %v1930
        %v2002 = vunpack.c.l.b16 %v1931
        %v2003 = vunpack.c.l.b16 %v1932
        %v2004 = vpack.c.b16 %v1973, %v1972
        %v2005 = vpack.c.b16 %v1975, %v1974
        %v2006 = vpack.c.b16 %v1977, %v1976
        %v2007 = vpack.c.b16 %v1979, %v1978
        %v2008 = vpack.c.b16 %v1981, %v1980
        %v2009 = vpack.c.b16 %v1983, %v1982
        %v2010 = vpack.c.b16 %v1985, %v1984
        %v2011 = vpack.c.b16 %v1987, %v1986
        %v2012 = vpack.c.b16 %v1989, %v1988
        %v2013 = vpack.c.b16 %v1991, %v1990
        %v2014 = vpack.c.b16 %v1993, %v1992
        %v2015 = vpack.c.b16 %v1995, %v1994
        %v2016 = vpack.c.b16 %v1997, %v1996
        %v2017 = vpack.c.b16 %v1999, %v1998
        %v2018 = vpack.c.b16 %v2001, %v2000
        %v2019 = vpack.c.b16 %v2003, %v2002
        %2036 = vmatprep.subr.bf16.mxu0 0
        %2037 = vmatpush1.bf16.msra.mxu0 %v2004
        %2038 = vmatprep.subr.bf16.mxu0 0
        %2039 = vmatpush1.bf16.msra.mxu0 %v2005
        %2040 = vmatprep.subr.bf16.mxu0 0
        %2041 = vmatpush1.bf16.msra.mxu0 %v2006
        %2042 = vmatprep.subr.bf16.mxu0 0
        %2043 = vmatpush1.bf16.msra.mxu0 %v2007
        %2044 = vmatprep.subr.bf16.mxu0 0
        %2045 = vmatpush1.bf16.msra.mxu0 %v2008
        %2046 = vmatprep.subr.bf16.mxu0 0
        %2047 = vmatpush1.bf16.msra.mxu0 %v2009
        %2048 = vmatprep.subr.bf16.mxu0 0
        %2049 = vmatpush1.bf16.msra.mxu0 %v2010
        %2050 = vmatprep.subr.bf16.mxu0 0
        %2051 = vmatpush1.bf16.msra.mxu0 %v2011
        %2052 = vmatprep.subr.bf16.mxu0 0
        %2053 = vmatpush1.bf16.msra.mxu0 %v2012
        %2054 = vmatprep.subr.bf16.mxu0 0
        %2055 = vmatpush1.bf16.msra.mxu0 %v2013
        %2056 = vmatprep.subr.bf16.mxu0 0
        %2057 = vmatpush1.bf16.msra.mxu0 %v2014
        %2058 = vmatprep.subr.bf16.mxu0 0
        %2059 = vmatpush1.bf16.msra.mxu0 %v2015
        %2060 = vmatprep.subr.bf16.mxu0 0
        %2061 = vmatpush1.bf16.msra.mxu0 %v2016
        %2062 = vmatprep.subr.bf16.mxu0 0
        %2063 = vmatpush1.bf16.msra.mxu0 %v2017
        %2064 = vmatprep.subr.bf16.mxu0 0
        %2065 = vmatpush1.bf16.msra.mxu0 %v2018
        %2066 = vmatprep.subr.bf16.mxu0 0
        %2067 = vmatpush1.bf16.msra.mxu0 %v2019
        %2068 = vmatprep.mubr.bf16.mxu0 %v1900
        %2069 = vmatmul.mubr.bf16.gmra.mrb[0].mxu0 %v1899
        %v2070 = vpop.f32.mrb[0].mxu0
        %v2071 = vadd.f32 %v1938, %v2070
        %v2072 = vpop.f32.mrb[0].mxu0
        %v2073 = vpop.f32.mrb[0].mxu0
        %v2074 = vpop.f32.mrb[0].mxu0
        %2075 = vdwg.mxu0
        %v2076 = vadd.f32 %v1730, %v2071
        %2077 = vadd.xlane.f32.xlu0 %v2076
        %v2078 = vpop.xlane.xlu0 %2077
        %v2079 = vmul.f32 %v2078, %v722
        %v2080 = vsub.f32 %v2076, %v2079
        %v2081 = vmul.f32 %v2080, %v2080
        %2082 = vadd.xlane.f32.xlu0 %v2081
        %v2083 = vpop.xlane.xlu0 %2082
        %v2084 = vmul.f32 %v2083, %v722
        %v2085 = vadd.f32 %v2084, 1e-05
        %v2086 = vrsqrt.pop %v2085
        %v2087 = vmul.f32 %v2080, %v2086
        %v2088 = vld [vmem:[%s16] sm:$0x1]
        %v2090 = vlaneseq
        %v2091 = vshrl.u32 %v2090, 7
        %v2092 = vsub.s32 0, %v2091
        %v2093 = vrot.slane %v2088, %v2092
        %v2095 = vmul.f32 %v2087, %v2093
        %v2096 = vld [vmem:[%s17] sm:$0x1]
        %v2098 = vlaneseq
        %v2099 = vshrl.u32 %v2098, 7
        %v2100 = vsub.s32 0, %v2099
        %v2101 = vrot.slane %v2096, %v2100
        %v2103 = vadd.f32 %v2095, %v2101
        %2104 = vst [vmem:[%s716] sm:$0xff] %v2103
        %s2105 = sand.u32 %s452, 1
        %s2106 = scalar_lea.sflag [#allocation4], %s2105
        %s2107 = sand.u32 %s452, 1
        %s2108 = smul.addr %s2107, 8
        %s2109 = scalar_lea.vmem [#allocation14], %s2108
        // Predicated region
        $region121: #{tpu_custom_call.1} parent=91 // pred_check
          %p2110 = pneg %p462
        $region122: #{tpu_custom_call.1} parent=91 // pred_check_branch
          %2112 = sbr.rel (%p2110) target = $region124
        $region123: #{tpu_custom_call.1} parent=91 // pred_region
          %s2114 = ssub.s32 128, 128
          %2115 = vsyncadd %s2106, %s2114
          %s2116 = sadd.s32 %s45, %s44
          %s2117 = smul.addr %s2116, 128
          %s2118 = scalar_lea.hbm %s18, %s2117
          %s2120 = sshll.u32 %s2109, 4
          %s2121 = int_to_ptr.vmem [resolvable:$true] %s2120
          %2123 = dma.vmem_to_hbm [thread:$0]  %s2121, 128, %s2118, %s2106
        $region124: #{tpu_custom_call.1} parent=91 // pred_fallthru
          _
      $region92: #{tpu_custom_call.1} parent=5 // pred_fallthru
        _
      %p2124 = scmp.le.s32.totalorder 2, %s35
      // Predicated region
      $region125: #{tpu_custom_call.1} parent=5 // pred_check
        %p2125 = pneg %p2124
      $region126: #{tpu_custom_call.1} parent=5 // pred_check_branch
        %2127 = sbr.rel (%p2125) target = $region128
      $region127: #{tpu_custom_call.1} parent=5 // pred_region
        %s2128 = ssub.s32 %s35, 2
        // Predicated region
        $region129: #{tpu_custom_call.1} parent=127 // pred_check
          %p2129 = pneg %p468
        $region130: #{tpu_custom_call.1} parent=127 // pred_check_branch
          %2131 = sbr.rel (%p2129) target = $region132
        $region131: #{tpu_custom_call.1} parent=127 // pred_region
          %s2132 = sand.u32 %s453, 1
          %s2133 = scalar_lea.sflag [#allocation4], %s2132
          %s2134 = sand.u32 %s453, 1
          %s2135 = smul.addr %s2134, 8
          %s2136 = scalar_lea.vmem [#allocation14], %s2135
          %2137 = dma.done %s2133, 128
        $region132: #{tpu_custom_call.1} parent=127 // pred_fallthru
          _
      $region128: #{tpu_custom_call.1} parent=5 // pred_fallthru
        _
    $region6: #{tpu_custom_call.1} parent=1 // loop_footer
      %s39 = sadd.s32 1, %s35
    $region7: #{tpu_custom_call.1} parent=1 // loop_footer_branch
      %34 = sbr.rel target = $region3
    $region8: #{tpu_custom_call.1} parent=1 // loop_exit
      _
    %2138 = vsyncpa [#allocation3], 1
    %s2139 = scalar_lea.sflag [#allocation3], 1
    %2140 = vsyncpa %s2139, 1
    %2141 = vsyncpa [#allocation6], 1
    %s2142 = scalar_lea.sflag [#allocation6], 1
    %2143 = vsyncpa %s2142, 1
    %2144 = vsyncpa [#allocation9], 1
    %2145 = vsyncpa [#allocation12], 1
    %2146 = vsyncpa [#allocation4], 1
    %s2147 = scalar_lea.sflag [#allocation4], 1
    %2148 = vsyncpa %s2147, 1

</llo_original>
